<compile_context>
chip_gen: v7x
topology: tpu7x:2x2x1
jax: 0.10.0
libtpu: 0.0.40
codegen_flags: <defaults>
</compile_context>

<pallas_src>
import functools

import jax
import jax.numpy as jnp
import numpy as np
from jax import lax
from jax.experimental import pallas as pl
from jax.experimental.pallas import tpu as pltpu

PAD = 512                 # adjacency padding multiple / contraction tile (tk)
LANE = 128                # lane-dense embedding width (D zero-padded up to this)
RESIDENT_CUR_MAX = 40 * 1024 * 1024   # keep `cur` resident only if it fits v7x VMEM


def _round_up(x, m):
    return ((x + m - 1) // m) * m


# ----------------------------------------------------------------------------
# Pallas kernel 1: one fused GCN propagation layer
#   grid = (Np//tm, max_nnz_k); adjacency column-tiles are visited through a
#   scalar-prefetched per-row-tile index table (zero tiles skipped); `cur` is
#   VMEM-resident; outputs: bf16 next-layer tensor + f32 running-mean acc.
# ----------------------------------------------------------------------------
def _gcn_layer_kernel(kidx_ref, knnz_ref, adj_ref, cur_ref, acc_ref,
                      next_ref, accout_ref, scr_ref, *, tk, resident_cur):
    i = pl.program_id(0)
    k = pl.program_id(1)

    @pl.when(k == 0)
    def _():
        scr_ref[...] = jnp.zeros_like(scr_ref)

    @pl.when(k < knnz_ref[i])           # skip all-zero adjacency tiles (MXU + DMA)
    def _():
        if resident_cur:
            kk = kidx_ref[i, k]
            start = pl.multiple_of(kk * tk, tk)
            c = cur_ref[pl.ds(start, tk), :]
        else:
            c = cur_ref[...]
        scr_ref[...] += jnp.dot(adj_ref[...], c,
                                preferred_element_type=jnp.float32)

    @pl.when(k == pl.num_programs(1) - 1)
    def _():
        s = scr_ref[...]
        next_ref[...] = s.astype(next_ref.dtype)      # bf16 write (half the bytes)
        accout_ref[...] = acc_ref[...] + s            # fused layer-mean accumulate


def gcn_layer(graph, cur_bf16, acc_f32):
    adj, kidx, knnz = graph["adj"], graph["kidx"], graph["knnz"]
    tm, tk = graph["tm"], graph["tk"]
    Np, Dp = cur_bf16.shape
    num_i = Np // tm
    max_nnz = kidx.shape[1]

    cur_bytes = Np * Dp * 2
    resident_cur = cur_bytes <= RESIDENT_CUR_MAX
    if resident_cur:
        # block index never changes => `cur` is DMA'd exactly once per layer
        cur_spec = pl.BlockSpec((Np, Dp), lambda i, k, kidx, knnz: (0, 0))
    else:
        # TODO(synk): huge-graph fallback — stream the k-tile of `cur` instead.
        cur_spec = pl.BlockSpec((tk, Dp), lambda i, k, kidx, knnz: (kidx[i, k], 0))

    # size VMEM budget to hold the resident operand + double-buffered tiles,
    # capped below v7x's 64 MiB/TC physical VMEM.
    vmem_limit = int(min(max(32 * 1024 * 1024,
                             (cur_bytes if resident_cur else 0) + 16 * 1024 * 1024),
                         56 * 1024 * 1024))

    return pl.pallas_call(
        functools.partial(_gcn_layer_kernel, tk=tk, resident_cur=resident_cur),
        out_shape=(jax.ShapeDtypeStruct((Np, Dp), jnp.bfloat16),   # next layer (bf16)
                   jax.ShapeDtypeStruct((Np, Dp), jnp.float32)),   # running sum (f32)
        grid_spec=pltpu.PrefetchScalarGridSpec(
            num_scalar_prefetch=2,
            grid=(num_i, max_nnz),
            in_specs=[
                pl.BlockSpec((tm, tk), lambda i, k, kidx, knnz: (i, kidx[i, k])),
                cur_spec,
                pl.BlockSpec((tm, Dp), lambda i, k, kidx, knnz: (i, 0)),
            ],
            out_specs=(
                pl.BlockSpec((tm, Dp), lambda i, k, kidx, knnz: (i, 0)),
                pl.BlockSpec((tm, Dp), lambda i, k, kidx, knnz: (i, 0)),
            ),
            scratch_shapes=[pltpu.VMEM((tm, Dp), jnp.float32)]),
        compiler_params=pltpu.CompilerParams(
            dimension_semantics=("parallel", "arbitrary"),
            vmem_limit_bytes=vmem_limit),
        cost_estimate=graph["cost"],
    )(kidx, knnz, adj, cur_bf16, acc_f32)


def gcn_propagate_mean(graph, emb_padded_f32, L):
    """cur_{l+1} = A_norm @ cur_l ; returns mean([emb, cur_1, ..., cur_L])."""
    acc = emb_padded_f32
    cur = emb_padded_f32.astype(jnp.bfloat16)
    for _ in range(L):          # L is small & static; layer dependence forces 1 call/layer
        cur, acc = gcn_layer(graph, cur, acc)
    return acc * (1.0 / float(L + 1))


# ----------------------------------------------------------------------------
# Pallas kernel 2: BPR loss   loss = -mean(log_sigmoid(<u,p> - <u,n>))
#   operands are lane-dense [Bp,128] rows gathered from the padded embedding.
# ----------------------------------------------------------------------------
def _bpr_kernel(u_ref, p_ref, n_ref, out_ref, *, b_true):
    u = u_ref[...]
    diff = (jnp.sum(u * p_ref[...], axis=-1, keepdims=True)
            - jnp.sum(u * n_ref[...], axis=-1, keepdims=True))
    row = lax.broadcasted_iota(jnp.int32, diff.shape, 0)
    ls = jnp.where(row < b_true, jax.nn.log_sigmoid(diff), 0.0)
    out_ref[0] = -jnp.sum(ls) / float(b_true)


def bpr_loss(u, p, n, b_true):
    return pl.pallas_call(
        functools.partial(_bpr_kernel, b_true=b_true),
        out_shape=jax.ShapeDtypeStruct((1,), jnp.float32),
        in_specs=[pl.BlockSpec(memory_space=pltpu.MemorySpace.VMEM)] * 3,
        out_specs=pl.BlockSpec(memory_space=pltpu.MemorySpace.SMEM),
    )(u, p, n)[0]


# ----------------------------------------------------------------------------
# Pallas kernel 3a: all_score = exp((z1 @ z2^T)/temp), row-tiled (for top-k)
# ----------------------------------------------------------------------------
def _sim_exp_kernel(z1_ref, z2_ref, out_ref, *, inv_temp):
    sim = lax.dot_general(z1_ref[...], z2_ref[...],
                          dimension_numbers=(((1,), (1,)), ((), ())),
                          preferred_element_type=jnp.float32)
    out_ref[...] = jnp.exp(sim * inv_temp)


def sim_exp(z1, z2, temp, tb):
    Bp, Dp = z1.shape
    return pl.pallas_call(
        functools.partial(_sim_exp_kernel, inv_temp=1.0 / float(temp)),
        out_shape=jax.ShapeDtypeStruct((Bp, Bp), jnp.float32),
        grid_spec=pltpu.PrefetchScalarGridSpec(
            num_scalar_prefetch=0,
            grid=(Bp // tb,),
            in_specs=[pl.BlockSpec((tb, Dp), lambda i: (i, 0)),
                      pl.BlockSpec((Bp, Dp), lambda i: (0, 0))],
            out_specs=pl.BlockSpec((tb, Bp), lambda i: (i, 0))),
        compiler_params=pltpu.CompilerParams(dimension_semantics=("parallel",)),
    )(z1, z2)


# ----------------------------------------------------------------------------
# Pallas kernel 3b: row-tiled SSL reduction (recomputes exp(sim/T) from the
#   tiny z operands so the BxB score array is never re-read)
#   per-row:  pos = <z1_r, z2_r>;  pos_score = sum_c mask[r,c]*exp(sim[r,c]/T)
#   ssl_mi   = -mean(log(pos_score + pos))
# ----------------------------------------------------------------------------
def _ssl_reduce_kernel(z1_ref, z2_ref, mask_ref, out_ref, *, inv_temp, b_true, tb):
    i = pl.program_id(0)
    z1 = z1_ref[...]
    start = pl.multiple_of(i * tb, tb)
    z2_rows = z2_ref[pl.ds(start, tb), :]
    sim = lax.dot_general(z1, z2_ref[...],
                          dimension_numbers=(((1,), (1,)), ((), ())),
                          preferred_element_type=jnp.float32)
    score = jnp.exp(sim * inv_temp)
    pos = jnp.sum(z1 * z2_rows, axis=-1, keepdims=True)
    pos_score = jnp.sum(mask_ref[...].astype(jnp.float32) * score,
                        axis=-1, keepdims=True)
    row = i * tb + lax.broadcasted_iota(jnp.int32, (tb, 1), 0)
    val = jnp.where(row < b_true, jnp.log(pos_score + pos), 0.0)
    out_ref[i] = jnp.sum(val)


def ssl_reduce(z1, z2, pos_mask_bf16, temp, b_true, tb):
    Bp, Dp = z1.shape
    nt = Bp // tb
    partials = pl.pallas_call(
        functools.partial(_ssl_reduce_kernel, inv_temp=1.0 / float(temp),
                          b_true=b_true, tb=tb),
        out_shape=jax.ShapeDtypeStruct((nt,), jnp.float32),
        grid_spec=pltpu.PrefetchScalarGridSpec(
            num_scalar_prefetch=0,
            grid=(nt,),
            in_specs=[pl.BlockSpec((tb, Dp), lambda i: (i, 0)),
                      pl.BlockSpec((Bp, Dp), lambda i: (0, 0)),
                      pl.BlockSpec((tb, Bp), lambda i: (i, 0))],
            out_specs=pl.BlockSpec(memory_space=pltpu.MemorySpace.SMEM)),
        compiler_params=pltpu.CompilerParams(dimension_semantics=("arbitrary",)),
    )(z1, z2, pos_mask_bf16)
    return -jnp.sum(partials) / float(b_true)


# ----------------------------------------------------------------------------
# Plain-JAX glue (adjacency + tile-sparsity tables, normalization, top-k)
# ----------------------------------------------------------------------------
def build_graph(user_ids, item_ids, user_num, item_num):
    """Dense D^{-1/2}(A+A^T)D^{-1/2}, zero-padded, plus per-row-tile nnz tables."""
    N = user_num + item_num
    A = np.zeros((N, N), np.float32)
    A[user_ids, item_ids + user_num] = 1.0
    A = A + A.T
    deg = A.sum(axis=1)
    dinv = np.where(deg > 0, deg ** -0.5, 0.0).astype(np.float32)
    A = (dinv[:, None] * A) * dinv[None, :]

    Np = max(PAD, _round_up(N, PAD))
    A_pad = np.zeros((Np, Np), np.float32)
    A_pad[:N, :N] = A

    tk = min(PAD, Np)
    tm = PAD if Np // PAD >= 2 else max(256, Np // 2)   # keep >=2 row tiles (megacore)
    num_i, num_k = Np // tm, Np // tk

    nz = (np.abs(A_pad).reshape(num_i, tm, num_k, tk).sum(axis=(1, 3)) > 0)
    knnz = nz.sum(axis=1).astype(np.int32)
    max_nnz = max(1, int(knnz.max()))
    kidx = np.zeros((num_i, max_nnz), np.int32)
    for r in range(num_i):
        cols = np.nonzero(nz[r])[0]
        if cols.size:
            kidx[r, :cols.size] = cols
            kidx[r, cols.size:] = cols[-1]   # repeat last idx => no extra DMA on padding

    nnz_tiles = max(1, int(knnz.sum()))
    cost = pl.CostEstimate(
        flops=2 * nnz_tiles * tm * tk * LANE,
        transcendentals=0,
        bytes_accessed=nnz_tiles * tm * tk * 2 + Np * LANE * (2 + 4 + 2 + 4))

    return dict(adj=jnp.asarray(A_pad, jnp.bfloat16),
                kidx=jnp.asarray(kidx), knnz=jnp.asarray(knnz),
                n_nodes=N, tm=tm, tk=tk, cost=cost)


def normalized_unique(emb_padded, ids):
    # TODO(synk): `normalized_unique` helper is undefined in the reference;
    # uniqueness filtering is skipped (static shapes) — gather + L2 normalize only.
    g = emb_padded[ids]
    return g / (jnp.linalg.norm(g, axis=-1, keepdims=True) + 1e-12)


def sampling_pos_matrix(all_score, kpr, b_true):
    """Top-K mask per row (diag included in top-k, then zeroed), bf16."""
    Bp = all_score.shape[0]
    K = min(Bp, max(1, int(kpr * b_true)))
    col_valid = jnp.arange(Bp) < b_true
    score = jnp.where(col_valid[None, :], all_score, 0.0)
    _, idx = lax.top_k(score, K)
    pos = jnp.zeros((Bp, Bp), jnp.float32).at[jnp.arange(Bp)[:, None], idx].set(1.0)
    pos = pos * (1.0 - jnp.eye(Bp, dtype=jnp.float32))
    pos = pos * col_valid[None, :].astype(jnp.float32)
    return pos.astype(jnp.bfloat16)


def ssl_compute(z, temp, kpr, b_true, tb):
    all_score = sim_exp(z, z, temp, tb)                        # Pallas, row-tiled
    pos_mask = sampling_pos_matrix(all_score, kpr, b_true)     # top-k in plain JAX
    # TODO(synk): `judge` MLP gating (self.MLP) and tao_sample thresholding are
    # undefined in the reference module; the top-k positive mask is used directly.
    return ssl_reduce(z, z, pos_mask, temp, b_true, tb)        # Pallas, recompute exp


def model_forward(params, graph, user_id, pos_item, neg_item, opt):
    user_num, D = params["user_emb"].shape
    emb0 = jnp.concatenate([params["user_emb"], params["item_emb"]], axis=0)
    n_nodes = graph["n_nodes"]
    Np = graph["adj"].shape[0]
    Dp = _round_up(D, LANE)
    # zero-pad to lane-dense [Np, 128]; padded rows/cols stay exactly zero, so
    # all downstream dot products / sums / norms over the last axis are unchanged.
    emb_padded = jnp.zeros((Np, Dp), jnp.float32).at[:n_nodes, :D].set(emb0)

    # --- GCN propagation + fused layer mean (tiled Pallas hot path) ---
    mean_emb = gcn_propagate_mean(graph, emb_padded, opt["L"])   # stays [Np, 128]

    # TODO(synk): gumbel mask learners / gnn_augmentation / rw_adj are undefined
    # in the reference module; edge/node augmented views fall back to the base
    # propagation (they alias user/item embeddings) and their sparsity
    # regularizers are zero.
    edge_reg = jnp.float32(0.0)
    node_reg = jnp.float32(0.0)

    B = int(user_id.shape[0])
    if B > 256:
        Bp, tb = _round_up(B, 256), 256
    else:
        Bp, tb = _round_up(B, 8), _round_up(B, 8)

    def pad_rows(x):
        if x.shape[0] == Bp:
            return x
        return jnp.zeros((Bp,) + x.shape[1:], x.dtype).at[:x.shape[0]].set(x)

    # lane-dense gathers straight from the padded [Np,128] mean embedding
    u = pad_rows(mean_emb[user_id])
    p = pad_rows(mean_emb[user_num + pos_item])
    n = pad_rows(mean_emb[user_num + neg_item])

    # --- BPR losses (edge/node views alias the base view -> compute once) ---
    rec_loss = bpr_loss(u, p, n, B)
    rec_loss_edge = rec_loss
    rec_loss_node = rec_loss

    # --- SSL contrastive losses (edge/node normalized views alias base ones) ---
    nu = pad_rows(normalized_unique(mean_emb, user_id))
    ni = pad_rows(normalized_unique(mean_emb, user_num + pos_item))
    temp, kpr = opt["ssl_temp"], opt["K_pos_ratio"]
    score_user = ssl_compute(nu, temp, kpr, B, tb)   # == user edge == user node view
    score_item = ssl_compute(ni, temp, kpr, B, tb)   # == item edge == item node view
    clloss = 2.0 * (score_user + score_item)

    loss = (opt["rec_loss_reg"] * (rec_loss_edge + rec_loss_node)
            + rec_loss
            + opt["ssl_loss_reg"] * clloss
            + opt["sparse_reg"] * (node_reg + edge_reg))
    return loss


# ----------------------------------------------------------------------------
# Demo
# ----------------------------------------------------------------------------
if __name__ == "__main__":
    user_num, item_num, emb_dim = 24, 40, 32
    batch = 8
    opt = dict(L=2, ssl_temp=0.2, rec_loss_reg=0.1, ssl_loss_reg=0.05,
               sparse_reg=0.01, K_pos_ratio=0.5)

    key = jax.random.PRNGKey(0)
    k_u, k_i, k_inter, k_uid, k_pos, k_neg = jax.random.split(key, 6)

    params = {
        "user_emb": 0.1 * jax.random.normal(k_u, (user_num, emb_dim), jnp.float32),
        "item_emb": 0.1 * jax.random.normal(k_i, (item_num, emb_dim), jnp.float32),
    }

    # synthetic interaction list (deterministic)
    n_inter = 128
    inter = jax.random.randint(k_inter, (n_inter, 2), 0,
                               jnp.array([user_num, item_num]))
    inter = np.asarray(inter)
    graph = build_graph(inter[:, 0], inter[:, 1], user_num, item_num)

    user_id = jax.random.randint(k_uid, (batch,), 0, user_num)
    pos_item = jax.random.randint(k_pos, (batch,), 0, item_num)
    neg_item = jax.random.randint(k_neg, (batch,), 0, item_num)

    loss = model_forward(params, graph, user_id, pos_item, neg_item, opt)
    loss = jax.block_until_ready(loss)
    assert jnp.isfinite(loss), f"non-finite loss: {loss}"
    print("KERNEL_OK")
</pallas_src>

<mosaic_0001>
module attributes {stable_mosaic.version = 11 : i64} {
  func.func @_gcn_layer_kernel(%arg0: i32, %arg1: i32, %arg2: memref<2x1xi32, #tpu.memory_space<smem>>, %arg3: memref<2xi32, #tpu.memory_space<smem>>, %arg4: memref<256x512xbf16, #tpu.memory_space<vmem>>, %arg5: memref<512x128xbf16, #tpu.memory_space<vmem>>, %arg6: memref<256x128xf32, #tpu.memory_space<vmem>>, %arg7: memref<256x128xbf16, #tpu.memory_space<vmem>>, %arg8: memref<256x128xf32, #tpu.memory_space<vmem>>, %arg9: memref<256x128xf32, #tpu.memory_space<vmem>>) attributes {dimension_semantics = [#tpu.dimension_semantics<parallel>, #tpu.dimension_semantics<arbitrary>], iteration_bounds = array<i64: 2, 1>, scalar_prefetch = 2 : i64, scratch_operands = 1 : i64, tpu.core_type = #tpu.core_type<tc>, window_params = [{transform_indices = @transform_0, window_bounds = array<i64: 256, 512>}, {pipeline_mode = #tpu.pipeline_mode<synchronous>, transform_indices = @transform_1, window_bounds = array<i64: 512, 128>}, {transform_indices = @transform_2, window_bounds = array<i64: 256, 128>}, {transform_indices = @transform_3, window_bounds = array<i64: 256, 128>}, {transform_indices = @transform_4, window_bounds = array<i64: 256, 128>}]} {
    %c0_i32 = arith.constant 0 : i32
    %0 = arith.cmpi eq, %arg1, %c0_i32 : i32
    %1 = arith.extui %0 : i1 to i32
    %c0_i32_0 = arith.constant 0 : i32
    %2 = arith.cmpi ne, %1, %c0_i32_0 : i32
    scf.if %2 {
      %cst = arith.constant 0.000000e+00 : f32
      %11 = vector.broadcast %cst : f32 to vector<256x128xf32>
      %c0 = arith.constant 0 : index
      %c0_4 = arith.constant 0 : index
      %12 = vector.load %arg9[%c0, %c0_4] : memref<256x128xf32, #tpu.memory_space<vmem>>, vector<256x128xf32>
      tpu.vector_store %arg9[%c0, %c0_4], %11 {strides = array<i32>} : memref<256x128xf32, #tpu.memory_space<vmem>>, vector<256x128xf32>,
    } else {
    }
    %3 = arith.index_cast %arg0 : i32 to index
    %4 = memref.load %arg3[%3] : memref<2xi32, #tpu.memory_space<smem>>
    %5 = arith.cmpi slt, %arg1, %4 : i32
    %6 = arith.extui %5 : i1 to i32
    %c0_i32_1 = arith.constant 0 : i32
    %7 = arith.cmpi ne, %6, %c0_i32_1 : i32
    scf.if %7 {
      %11 = arith.index_cast %arg0 : i32 to index
      %12 = arith.index_cast %arg1 : i32 to index
      %13 = memref.load %arg2[%11, %12] : memref<2x1xi32, #tpu.memory_space<smem>>
      %c512_i32 = arith.constant 512 : i32
      %14 = arith.muli %13, %c512_i32 : i32
      %15 = tpu.assume_multiple %14, 512 : i32
      %16 = arith.index_cast %15 : i32 to index
      %c0 = arith.constant 0 : index
      %17 = vector.load %arg5[%16, %c0] : memref<512x128xbf16, #tpu.memory_space<vmem>>, vector<512x128xbf16>
      %c0_4 = arith.constant 0 : index
      %c0_5 = arith.constant 0 : index
      %18 = vector.load %arg9[%c0_4, %c0_5] : memref<256x128xf32, #tpu.memory_space<vmem>>, vector<256x128xf32>
      %c0_6 = arith.constant 0 : index
      %c0_7 = arith.constant 0 : index
      %19 = vector.load %arg4[%c0_6, %c0_7] : memref<256x512xbf16, #tpu.memory_space<vmem>>, vector<256x512xbf16>
      %cst = arith.constant dense<0.000000e+00> : vector<256x128xf32>
      %20 = tpu.matmul %19, %17, %cst {dimension_numbers = #tpu.dot_dimension_numbers<[1], [0], [0], [1], [0, 0, 1, 1], [], []>} : vector<256x512xbf16>, vector<512x128xbf16>, vector<256x128xf32> -> vector<256x128xf32>
      %21 = arith.addf %18, %20 : vector<256x128xf32>
      %c0_8 = arith.constant 0 : index
      %c0_9 = arith.constant 0 : index
      %22 = vector.load %arg9[%c0_8, %c0_9] : memref<256x128xf32, #tpu.memory_space<vmem>>, vector<256x128xf32>
      tpu.vector_store %arg9[%c0_8, %c0_9], %21 {strides = array<i32>} : memref<256x128xf32, #tpu.memory_space<vmem>>, vector<256x128xf32>,
    } else {
    }
    %c0_i32_2 = arith.constant 0 : i32
    %8 = arith.cmpi eq, %arg1, %c0_i32_2 : i32
    %9 = arith.extui %8 : i1 to i32
    %c0_i32_3 = arith.constant 0 : i32
    %10 = arith.cmpi ne, %9, %c0_i32_3 : i32
    scf.if %10 {
      %c0 = arith.constant 0 : index
      %c0_4 = arith.constant 0 : index
      %11 = vector.load %arg9[%c0, %c0_4] : memref<256x128xf32, #tpu.memory_space<vmem>>, vector<256x128xf32>
      %12 = arith.truncf %11 : vector<256x128xf32> to vector<256x128xbf16>
      %c0_5 = arith.constant 0 : index
      %c0_6 = arith.constant 0 : index
      %13 = vector.load %arg7[%c0_5, %c0_6] : memref<256x128xbf16, #tpu.memory_space<vmem>>, vector<256x128xbf16>
      tpu.vector_store %arg7[%c0_5, %c0_6], %12 {strides = array<i32>} : memref<256x128xbf16, #tpu.memory_space<vmem>>, vector<256x128xbf16>,
      %c0_7 = arith.constant 0 : index
      %c0_8 = arith.constant 0 : index
      %14 = vector.load %arg6[%c0_7, %c0_8] : memref<256x128xf32, #tpu.memory_space<vmem>>, vector<256x128xf32>
      %15 = arith.addf %14, %11 : vector<256x128xf32>
      %c0_9 = arith.constant 0 : index
      %c0_10 = arith.constant 0 : index
      %16 = vector.load %arg8[%c0_9, %c0_10] : memref<256x128xf32, #tpu.memory_space<vmem>>, vector<256x128xf32>
      tpu.vector_store %arg8[%c0_9, %c0_10], %15 {strides = array<i32>} : memref<256x128xf32, #tpu.memory_space<vmem>>, vector<256x128xf32>,
    } else {
    }
    return
  }
  func.func @transform_0(%arg0: i32, %arg1: i32, %arg2: memref<2x1xi32, #tpu.memory_space<smem>>, %arg3: memref<2xi32, #tpu.memory_space<smem>>) -> (i32, i32) {
    %0 = arith.index_cast %arg0 : i32 to index
    %1 = arith.index_cast %arg1 : i32 to index
    %2 = memref.load %arg2[%0, %1] : memref<2x1xi32, #tpu.memory_space<smem>>
    %c0_i32 = arith.constant 0 : i32
    return %arg0, %2 : i32, i32
  }
  func.func @transform_1(%arg0: i32, %arg1: i32, %arg2: memref<2x1xi32, #tpu.memory_space<smem>>, %arg3: memref<2xi32, #tpu.memory_space<smem>>) -> (i32, i32) {
    %c0_i32 = arith.constant 0 : i32
    %c0_i32_0 = arith.constant 0 : i32
    %c0_i32_1 = arith.constant 0 : i32
    return %c0_i32, %c0_i32_0 : i32, i32
  }
  func.func @transform_2(%arg0: i32, %arg1: i32, %arg2: memref<2x1xi32, #tpu.memory_space<smem>>, %arg3: memref<2xi32, #tpu.memory_space<smem>>) -> (i32, i32) {
    %c0_i32 = arith.constant 0 : i32
    %c0_i32_0 = arith.constant 0 : i32
    return %arg0, %c0_i32 : i32, i32
  }
  func.func @transform_3(%arg0: i32, %arg1: i32, %arg2: memref<2x1xi32, #tpu.memory_space<smem>>, %arg3: memref<2xi32, #tpu.memory_space<smem>>) -> (i32, i32) {
    %c0_i32 = arith.constant 0 : i32
    %c0_i32_0 = arith.constant 0 : i32
    return %arg0, %c0_i32 : i32, i32
  }
  func.func @transform_4(%arg0: i32, %arg1: i32, %arg2: memref<2x1xi32, #tpu.memory_space<smem>>, %arg3: memref<2xi32, #tpu.memory_space<smem>>) -> (i32, i32) {
    %c0_i32 = arith.constant 0 : i32
    %c0_i32_0 = arith.constant 0 : i32
    return %arg0, %c0_i32 : i32, i32
  }
}

</mosaic_0001>

<llo_original>
// kernel: tpu_custom_call.1
$region0: #{tpu_custom_call.1}
  #allocation0 [shape = 'u32[]', space=smem, size = 0x4, offset = 0x4, fixed_abs, tag = 'smem constant byte address 0x4 - core index']
  #allocation1 [shape = 'u32[144,128]{1,0:T(1,128)}', space=vmem, size = 0x12000, scoped, tag = 'internal scratch']
  #allocation2 [shape = 'f32[256,128]{1,0:T(8,128)}', space=vmem, size = 0x20000, scoped, tag = 'scratch operand']
  #allocation3 [shape = 's32[1]{0}', space=sflag, size = 0x4, scoped, tag = 'scoped memory for tpu_custom_call.1']
  #allocation4 [shape = 'u8[1024]{0}', space=smem, size = 0x400, scoped, tag = 'prefetched SMEM operand 0']
  #allocation5 [shape = 'u8[512]{0}', space=smem, size = 0x200, scoped, tag = 'prefetched SMEM operand 1']
  %s0 = inlined_call_operand.vmem [shape: s32[2,1], index: 0, kind: input, shape index: {}]
  %s1 = inlined_call_operand.vmem [shape: s32[2], index: 1, kind: input, shape index: {}]
  %s2 = inlined_call_operand.hbm [shape: bf16[512,512], index: 2, kind: input, shape index: {}]
  %s3 = inlined_call_operand.hbm [shape: bf16[512,128], index: 3, kind: input, shape index: {}]
  %s4 = inlined_call_operand.hbm [shape: f32[512,128], index: 4, kind: input, shape index: {}]
  %s5 = inlined_call_operand.hbm [shape: bf16[512,128], index: 5, kind: output, shape index: {0}]
  %s6 = inlined_call_operand.hbm [shape: f32[512,128], index: 6, kind: output, shape index: {1}]
  %7 = xla_tuple %s5, %s6
  %s8 = sld [smem:[#allocation0]]
  $region77: #{tpu_custom_call.1} parent=0
    _
  %s10 = ssub.s32 1, %s8
  %s11 = scalar_select 0, %s10, %s8
  %s12 = sshll.u32 %s0, 4
  %s13 = int_to_ptr.vmem [resolvable:$true] %s12
  %15 = dma.vmem_to_smem %s13, 32, [#allocation4], [#allocation3]
  %s16 = sshll.u32 %s1, 4
  %s17 = int_to_ptr.vmem [resolvable:$true] %s16
  %19 = dma.vmem_to_smem %s17, 16, [#allocation5], [#allocation3]
  %20 = dma.done [#allocation3], 48
  %21 = sfence
  $region1: #{tpu_custom_call.1} parent=0
    #allocation6 [shape = 'u8[524288]{0}', space=vmem, size = 0x80000, scoped, tag = 'input window, operand 2']
    #allocation7 [shape = 's32[2]{0}', space=sflag, size = 0x8, scoped, tag = 'scoped memory for tpu_custom_call.1']
    #allocation8 [shape = 's32[2]{0}', space=sflag, size = 0x8, scoped, tag = 'scoped memory for tpu_custom_call.1']
    #allocation9 [shape = 'u8[131072]{0}', space=vmem, size = 0x20000, scoped, tag = 'input window, operand 3, single buffered']
    #allocation10 [shape = 's32[1]{0}', space=sflag, size = 0x4, scoped, tag = 'scoped memory for tpu_custom_call.1']
    #allocation11 [shape = 'u8[262144]{0}', space=vmem, size = 0x40000, scoped, tag = 'input window, operand 4']
    #allocation12 [shape = 'u8[131072]{0}', space=vmem, size = 0x20000, scoped, tag = 'output window, operand 0']
    #allocation13 [shape = 'u8[262144]{0}', space=vmem, size = 0x40000, scoped, tag = 'output window, operand 1']
    #allocation14 [shape = 's32[2]{0}', space=sflag, size = 0x8, scoped, tag = 'scoped memory for tpu_custom_call.1']
    %22 = vsyncpa [#allocation7], 0
    %s23 = scalar_lea.sflag [#allocation7], 1
    %24 = vsyncpa %s23, 0
    %25 = vsyncpa [#allocation10], 0
    %26 = vsyncpa [#allocation8], 0
    %s27 = scalar_lea.sflag [#allocation8], 1
    %28 = vsyncpa %s27, 0
    %29 = vsyncpa [#allocation14], 0
    %s30 = scalar_lea.sflag [#allocation14], 1
    %31 = vsyncpa %s30, 0
    loop: start=0, step=1, limit=4
    $region2: #{tpu_custom_call.1} parent=1 // loop_pre_header
      _
    $region3: #{tpu_custom_call.1} parent=1 // loop_header
      %s33 = sphi 0, %s37
      %p34 = scmp.ge.s32.totalorder %s33, 4
      %s40 = sphi 0, %s52
      %s41 = sphi 0, %s48
      %s42 = sphi 0, %s40
      %s43 = sphi 0, %s41
      %s44 = sphi 0, %s42
      %s45 = sphi 0, %s43
      %s73 = sphi 0, %s75
      %s76 = sphi 0, %s73
      %s77 = sphi 0, %s76
      %s93 = sphi 0, %s77
      %s97 = sphi 0, %s97
      %s99 = sphi 0, %s97
      %s100 = sphi 0, %s99
      %s114 = sphi 0, %s100
      %s120 = sphi 0, %s122
      %s123 = sphi 0, %s120
      %s124 = sphi 0, %s123
      %s140 = sphi 0, %s124
      %s146 = sphi 0, %s148
      %s149 = sphi 0, %s146
      %s150 = sphi 0, %s149
      %s166 = sphi 0, %s150
      %s172 = sphi 0, %s174
      %s175 = sphi 0, %s172
      %s176 = sphi 0, %s175
      %s192 = sphi 0, %s176
    $region4: #{tpu_custom_call.1} parent=1 // loop_header_branch
      %36 = sbr.rel (%p34) target = $region8
    $region5: #{tpu_custom_call.1} parent=1 // loop_body
      %s38 = ssub.s32 %s33, 1
      %s39 = ssub.s32 %s33, 2
      %s46 = sadd.s32 1, %s41
      %p47 = scmp.ge.s32.totalorder %s46, 1
      %s48 = scalar_select %p47, 0, %s46
      %s49 = sadd.s32 1, %s40
      %s50 = scalar_select %p47, %s49, %s40
      %p51 = scmp.ge.s32.totalorder %s50, 2
      %s52 = scalar_select %p51, 0, %s50
      %s53 = sshra.s32 %s41, 7
      %s54 = sand.u32 %s41, 127
      %s55 = sadd.s32 %s53, %s40
      %s56 = smul.u32 %s55, 128
      %s57 = sshra.s32 %s41, 7
      %s58 = sand.u32 %s41, 127
      %s59 = sadd.s32 %s56, %s58
      %s60 = sld [smem:[#allocation4 + %s59]]
      %s61 = sshra.s32 %s48, 7
      %s62 = sand.u32 %s48, 127
      %s63 = sadd.s32 %s61, %s52
      %s64 = smul.u32 %s63, 128
      %s65 = sshra.s32 %s48, 7
      %s66 = sand.u32 %s48, 127
      %s67 = sadd.s32 %s64, %s66
      %s68 = sld [smem:[#allocation4 + %s67]]
      %s69 = ssub.s32 %s40, %s52
      %s70 = ssub.s32 %s60, %s68
      %s71 = sor.u32 %s69, %s70
      %p72 = scmp.eq.s32.totalorder %s71, 0
      %s74 = sadd.s32 %s73, 1
      %s75 = scalar_select %p72, %s73, %s74
      %p78 = pneg %p72
      %p79 = scmp.eq.s32.totalorder %s33, 1
      %p80 = por %p78, %p79
      %p81 = scmp.ne.s32.totalorder %s73, %s76
      %p82 = scmp.eq.s32.totalorder %s33, 0
      %p83 = por %p81, %p82
      %p84 = scmp.ne.s32.totalorder %s73, %s76
      %p85 = scmp.eq.s32.totalorder %s38, 1
      %p86 = por %p84, %p85
      %p87 = scmp.ne.s32.totalorder %s76, %s77
      %p88 = scmp.eq.s32.totalorder %s38, 0
      %p89 = por %p87, %p88
      %p90 = scmp.ne.s32.totalorder %s76, %s77
      %p91 = scmp.eq.s32.totalorder %s39, 1
      %p92 = por %p90, %p91
      %p94 = scmp.ne.s32.totalorder %s77, %s93
      %p95 = scmp.eq.s32.totalorder %s39, 0
      %p96 = por %p94, %p95
      %s98 = sadd.s32 %s97, 1
      %p101 = scmp.eq.s32.totalorder %s33, 1
      %p102 = scmp.ne.s32.totalorder %s97, %s99
      %p103 = scmp.eq.s32.totalorder %s33, 0
      %p104 = por %p102, %p103
      %p105 = scmp.ne.s32.totalorder %s97, %s99
      %p106 = scmp.eq.s32.totalorder %s38, 1
      %p107 = por %p105, %p106
      %p108 = scmp.ne.s32.totalorder %s99, %s100
      %p109 = scmp.eq.s32.totalorder %s38, 0
      %p110 = por %p108, %p109
      %p111 = scmp.ne.s32.totalorder %s99, %s100
      %p112 = scmp.eq.s32.totalorder %s39, 1
      %p113 = por %p111, %p112
      %p115 = scmp.ne.s32.totalorder %s100, %s114
      %p116 = scmp.eq.s32.totalorder %s39, 0
      %p117 = por %p115, %p116
      %s118 = ssub.s32 %s40, %s52
      %p119 = scmp.eq.s32.totalorder %s118, 0
      %s121 = sadd.s32 %s120, 1
      %s122 = scalar_select %p119, %s120, %s121
      %p125 = pneg %p119
      %p126 = scmp.eq.s32.totalorder %s33, 1
      %p127 = por %p125, %p126
      %p128 = scmp.ne.s32.totalorder %s120, %s123
      %p129 = scmp.eq.s32.totalorder %s33, 0
      %p130 = por %p128, %p129
      %p131 = scmp.ne.s32.totalorder %s120, %s123
      %p132 = scmp.eq.s32.totalorder %s38, 1
      %p133 = por %p131, %p132
      %p134 = scmp.ne.s32.totalorder %s123, %s124
      %p135 = scmp.eq.s32.totalorder %s38, 0
      %p136 = por %p134, %p135
      %p137 = scmp.ne.s32.totalorder %s123, %s124
      %p138 = scmp.eq.s32.totalorder %s39, 1
      %p139 = por %p137, %p138
      %p141 = scmp.ne.s32.totalorder %s124, %s140
      %p142 = scmp.eq.s32.totalorder %s39, 0
      %p143 = por %p141, %p142
      %s144 = ssub.s32 %s40, %s52
      %p145 = scmp.eq.s32.totalorder %s144, 0
      %s147 = sadd.s32 %s146, 1
      %s148 = scalar_select %p145, %s146, %s147
      %p151 = pneg %p145
      %p152 = scmp.eq.s32.totalorder %s33, 1
      %p153 = por %p151, %p152
      %p154 = scmp.ne.s32.totalorder %s146, %s149
      %p155 = scmp.eq.s32.totalorder %s33, 0
      %p156 = por %p154, %p155
      %p157 = scmp.ne.s32.totalorder %s146, %s149
      %p158 = scmp.eq.s32.totalorder %s38, 1
      %p159 = por %p157, %p158
      %p160 = scmp.ne.s32.totalorder %s149, %s150
      %p161 = scmp.eq.s32.totalorder %s38, 0
      %p162 = por %p160, %p161
      %p163 = scmp.ne.s32.totalorder %s149, %s150
      %p164 = scmp.eq.s32.totalorder %s39, 1
      %p165 = por %p163, %p164
      %p167 = scmp.ne.s32.totalorder %s150, %s166
      %p168 = scmp.eq.s32.totalorder %s39, 0
      %p169 = por %p167, %p168
      %s170 = ssub.s32 %s40, %s52
      %p171 = scmp.eq.s32.totalorder %s170, 0
      %s173 = sadd.s32 %s172, 1
      %s174 = scalar_select %p171, %s172, %s173
      %p177 = pneg %p171
      %p178 = scmp.eq.s32.totalorder %s33, 1
      %p179 = por %p177, %p178
      %p180 = scmp.ne.s32.totalorder %s172, %s175
      %p181 = scmp.eq.s32.totalorder %s33, 0
      %p182 = por %p180, %p181
      %p183 = scmp.ne.s32.totalorder %s172, %s175
      %p184 = scmp.eq.s32.totalorder %s38, 1
      %p185 = por %p183, %p184
      %p186 = scmp.ne.s32.totalorder %s175, %s176
      %p187 = scmp.eq.s32.totalorder %s38, 0
      %p188 = por %p186, %p187
      %p189 = scmp.ne.s32.totalorder %s175, %s176
      %p190 = scmp.eq.s32.totalorder %s39, 1
      %p191 = por %p189, %p190
      %p193 = scmp.ne.s32.totalorder %s176, %s192
      %p194 = scmp.eq.s32.totalorder %s39, 0
      %p195 = por %p193, %p194
      %p196 = scmp.le.s32.totalorder 1, %s33
      %p197 = scmp.lt.s32.totalorder %s33, 3
      %p198 = pnand %p196, %p197
      %p199 = pneg %p198
      // Predicated region
      $region9: #{tpu_custom_call.1} parent=5 // pred_check
        _
      $region10: #{tpu_custom_call.1} parent=5 // pred_check_branch
        %201 = sbr.rel (%p198) target = $region12
      $region11: #{tpu_custom_call.1} parent=5 // pred_region
        %s202 = ssub.s32 %s33, 1
        // Predicated region
        $region13: #{tpu_custom_call.1} parent=11 // pred_check
          %p203 = pneg %p110
        $region14: #{tpu_custom_call.1} parent=11 // pred_check_branch
          %205 = sbr.rel (%p203) target = $region16
        $region15: #{tpu_custom_call.1} parent=11 // pred_region
          %s207 = ssub.s32 4096, 4096
          %208 = vsyncadd [#allocation10], %s207
          %s209 = sshll.u32 [#allocation9], 4
          %s210 = int_to_ptr.vmem [resolvable:$true] %s209
          %215 = dma.hbm_to_vmem [thread:$0]  %s3, 4096, %s210, [#allocation10], 64, 64, 4
        $region16: #{tpu_custom_call.1} parent=11 // pred_fallthru
          _
      $region12: #{tpu_custom_call.1} parent=5 // pred_fallthru
        _
      %p216 = scmp.lt.s32.totalorder %s33, 2
      // Predicated region
      $region17: #{tpu_custom_call.1} parent=5 // pred_check
        %p217 = pneg %p216
      $region18: #{tpu_custom_call.1} parent=5 // pred_check_branch
        %219 = sbr.rel (%p217) target = $region20
      $region19: #{tpu_custom_call.1} parent=5 // pred_region
        // Predicated region
        $region21: #{tpu_custom_call.1} parent=19 // pred_check
          %p220 = pneg %p83
        $region22: #{tpu_custom_call.1} parent=19 // pred_check_branch
          %222 = sbr.rel (%p220) target = $region24
        $region23: #{tpu_custom_call.1} parent=19 // pred_region
          %s223 = sand.u32 %s33, 1
          %s224 = scalar_lea.sflag [#allocation7], %s223
          %s225 = sand.u32 %s73, 1
          %s226 = smul.addr %s225, 512
          %s227 = scalar_lea.vmem [#allocation6], %s226
          %s228 = sshra.s32 %s41, 7
          %s229 = sand.u32 %s41, 127
          %s230 = sadd.s32 %s228, %s40
          %s231 = smul.u32 %s230, 128
          %s232 = sshra.s32 %s41, 7
          %s233 = sand.u32 %s41, 127
          %s234 = sadd.s32 %s231, %s233
          %s235 = sld [smem:[#allocation4 + %s234]]
          %s236 = smul.u32 32, %s40
          %s237 = smul.u32 4, %s235
          %s239 = ssub.s32 8192, 8192
          %240 = vsyncadd %s224, %s239
          %s241 = smul.addr %s236, 4
          %s242 = sadd.s32 %s237, %s241
          %s243 = smul.addr %s242, 64
          %s244 = scalar_lea.hbm %s2, %s243
          %s245 = sshll.u32 %s227, 4
          %s246 = int_to_ptr.vmem [resolvable:$true] %s245
          %251 = dma.hbm_to_vmem [thread:$0]  %s244, 8192, %s246, %s224, 256, 256, 16
        $region24: #{tpu_custom_call.1} parent=19 // pred_fallthru
          _
        // Predicated region
        $region25: #{tpu_custom_call.1} parent=19 // pred_check
          %p252 = pneg %p130
        $region26: #{tpu_custom_call.1} parent=19 // pred_check_branch
          %254 = sbr.rel (%p252) target = $region28
        $region27: #{tpu_custom_call.1} parent=19 // pred_region
          %s255 = sand.u32 %s33, 1
          %s256 = scalar_lea.sflag [#allocation7], %s255
          %s257 = sand.u32 %s120, 1
          %s258 = smul.addr %s257, 256
          %s259 = scalar_lea.vmem [#allocation11], %s258
          %s260 = smul.u32 32, %s40
          %s262 = ssub.s32 4096, 4096
          %263 = vsyncadd %s256, %s262
          %s264 = smul.addr %s260, 128
          %s265 = scalar_lea.hbm %s4, %s264
          %s266 = sshll.u32 %s259, 4
          %s267 = int_to_ptr.vmem [resolvable:$true] %s266
          %272 = dma.hbm_to_vmem [thread:$0]  %s265, 4096, %s267, %s256, 128, 128, 8
        $region28: #{tpu_custom_call.1} parent=19 // pred_fallthru
          _
      $region20: #{tpu_custom_call.1} parent=5 // pred_fallthru
        _
      %p273 = scmp.le.s32.totalorder 1, %s33
      %p274 = scmp.lt.s32.totalorder %s33, 3
      %p275 = pnand %p273, %p274
      %p276 = pneg %p275
      // Predicated region
      $region29: #{tpu_custom_call.1} parent=5 // pred_check
        _
      $region30: #{tpu_custom_call.1} parent=5 // pred_check_branch
        %278 = sbr.rel (%p275) target = $region32
      $region31: #{tpu_custom_call.1} parent=5 // pred_region
        %s279 = ssub.s32 %s33, 1
        %s280 = sand.u32 %s38, 1
        %s281 = scalar_lea.sflag [#allocation7], %s280
        %s282 = sand.u32 %s76, 1
        %s283 = smul.addr %s282, 512
        %s284 = scalar_lea.vmem [#allocation6], %s283
        // Predicated region
        $region33: #{tpu_custom_call.1} parent=31 // pred_check
          %p285 = pneg %p89
        $region34: #{tpu_custom_call.1} parent=31 // pred_check_branch
          %287 = sbr.rel (%p285) target = $region36
        $region35: #{tpu_custom_call.1} parent=31 // pred_region
          %288 = dma.done %s281, 8192
        $region36: #{tpu_custom_call.1} parent=31 // pred_fallthru
          _
        // Predicated region
        $region37: #{tpu_custom_call.1} parent=31 // pred_check
          %p289 = pneg %p110
        $region38: #{tpu_custom_call.1} parent=31 // pred_check_branch
          %291 = sbr.rel (%p289) target = $region40
        $region39: #{tpu_custom_call.1} parent=31 // pred_region
          %292 = dma.done [#allocation10], 4096
        $region40: #{tpu_custom_call.1} parent=31 // pred_fallthru
          _
        %s293 = sand.u32 %s38, 1
        %s294 = scalar_lea.sflag [#allocation7], %s293
        %s295 = sand.u32 %s123, 1
        %s296 = smul.addr %s295, 256
        %s297 = scalar_lea.vmem [#allocation11], %s296
        // Predicated region
        $region41: #{tpu_custom_call.1} parent=31 // pred_check
          %p298 = pneg %p136
        $region42: #{tpu_custom_call.1} parent=31 // pred_check_branch
          %300 = sbr.rel (%p298) target = $region44
        $region43: #{tpu_custom_call.1} parent=31 // pred_region
          %301 = dma.done %s294, 4096
        $region44: #{tpu_custom_call.1} parent=31 // pred_fallthru
          _
        %s302 = sand.u32 %s38, 1
        %s303 = scalar_lea.sflag [#allocation7], %s302
        %s304 = sand.u32 %s76, 1
        %s305 = smul.addr %s304, 512
        %s306 = scalar_lea.vmem [#allocation6], %s305
        %p307 = pneg %p89
        %p308 = pneg %p86
        %p309 = pneg %p110
        %p310 = pneg %p107
        %s311 = sand.u32 %s38, 1
        %s312 = scalar_lea.sflag [#allocation7], %s311
        %s313 = sand.u32 %s123, 1
        %s314 = smul.addr %s313, 256
        %s315 = scalar_lea.vmem [#allocation11], %s314
        %p316 = pneg %p136
        %p317 = pneg %p133
        %p318 = pneg %p162
        %p319 = pneg %p159
        %s320 = sand.u32 %s149, 1
        %s321 = scalar_lea.sflag [#allocation8], %s320
        %s322 = sand.u32 %s149, 1
        %s323 = smul.addr %s322, 128
        %s324 = scalar_lea.vmem [#allocation12], %s323
        %p325 = pneg %p188
        %p326 = pneg %p185
        %s327 = sand.u32 %s175, 1
        %s328 = scalar_lea.sflag [#allocation14], %s327
        %s329 = sand.u32 %s175, 1
        %s330 = smul.addr %s329, 256
        %s331 = scalar_lea.vmem [#allocation13], %s330
        %s332 = sshra.s32 %s43, 7
        %s333 = sand.u32 %s43, 127
        %s334 = sadd.s32 %s332, %s42
        %s335 = smul.u32 %s334, 128
        %s336 = sshra.s32 %s43, 7
        %s337 = sand.u32 %s43, 127
        %s338 = sadd.s32 %s335, %s337
        %s339 = sld [smem:[#allocation4 + %s338]]
        %s340 = smul.u32 32, %s42
        %s341 = smul.u32 4, %s339
        %s342 = smul.u32 32, %s42
        %s343 = smul.u32 32, %s42
        %s344 = smul.u32 32, %s42
        %p346 = scmp.eq.s32.totalorder %s43, 0
        // Predicated region
        $region45: #{tpu_custom_call.1} parent=31 // pred_check
          %p347 = pneg %p346
        $region46: #{tpu_custom_call.1} parent=31 // pred_check_branch
          %349 = sbr.rel (%p347) target = $region48
        $region47: #{tpu_custom_call.1} parent=31 // pred_region
          %350 = vst [vmem:[#allocation2] sm:$0xff] 0.0
          %351 = vst [vmem:[#allocation2 + $0x8] sm:$0xff] 0.0
          %352 = vst [vmem:[#allocation2 + $0x10] sm:$0xff] 0.0
          %353 = vst [vmem:[#allocation2 + $0x18] sm:$0xff] 0.0
          %354 = vst [vmem:[#allocation2 + $0x20] sm:$0xff] 0.0
          %355 = vst [vmem:[#allocation2 + $0x28] sm:$0xff] 0.0
          %356 = vst [vmem:[#allocation2 + $0x30] sm:$0xff] 0.0
          %357 = vst [vmem:[#allocation2 + $0x38] sm:$0xff] 0.0
          %358 = vst [vmem:[#allocation2 + $0x40] sm:$0xff] 0.0
          %359 = vst [vmem:[#allocation2 + $0x48] sm:$0xff] 0.0
          %360 = vst [vmem:[#allocation2 + $0x50] sm:$0xff] 0.0
          %361 = vst [vmem:[#allocation2 + $0x58] sm:$0xff] 0.0
          %362 = vst [vmem:[#allocation2 + $0x60] sm:$0xff] 0.0
          %363 = vst [vmem:[#allocation2 + $0x68] sm:$0xff] 0.0
          %364 = vst [vmem:[#allocation2 + $0x70] sm:$0xff] 0.0
          %365 = vst [vmem:[#allocation2 + $0x78] sm:$0xff] 0.0
          %366 = vst [vmem:[#allocation2 + $0x80] sm:$0xff] 0.0
          %367 = vst [vmem:[#allocation2 + $0x88] sm:$0xff] 0.0
          %368 = vst [vmem:[#allocation2 + $0x90] sm:$0xff] 0.0
          %369 = vst [vmem:[#allocation2 + $0x98] sm:$0xff] 0.0
          %370 = vst [vmem:[#allocation2 + $0xa0] sm:$0xff] 0.0
          %371 = vst [vmem:[#allocation2 + $0xa8] sm:$0xff] 0.0
          %372 = vst [vmem:[#allocation2 + $0xb0] sm:$0xff] 0.0
          %373 = vst [vmem:[#allocation2 + $0xb8] sm:$0xff] 0.0
          %374 = vst [vmem:[#allocation2 + $0xc0] sm:$0xff] 0.0
          %375 = vst [vmem:[#allocation2 + $0xc8] sm:$0xff] 0.0
          %376 = vst [vmem:[#allocation2 + $0xd0] sm:$0xff] 0.0
          %377 = vst [vmem:[#allocation2 + $0xd8] sm:$0xff] 0.0
          %378 = vst [vmem:[#allocation2 + $0xe0] sm:$0xff] 0.0
          %379 = vst [vmem:[#allocation2 + $0xe8] sm:$0xff] 0.0
          %380 = vst [vmem:[#allocation2 + $0xf0] sm:$0xff] 0.0
          %381 = vst [vmem:[#allocation2 + $0xf8] sm:$0xff] 0.0
        $region48: #{tpu_custom_call.1} parent=31 // pred_fallthru
          _
        %s382 = sld [smem:[#allocation5 + %s42]]
        %p383 = scmp.lt.s32.totalorder %s43, %s382
        // Predicated region
        $region49: #{tpu_custom_call.1} parent=31 // pred_check
          %p384 = pneg %p383
        $region50: #{tpu_custom_call.1} parent=31 // pred_check_branch
          %386 = sbr.rel (%p384) target = $region52
        $region51: #{tpu_custom_call.1} parent=31 // pred_region
          %s387 = sshra.s32 %s43, 7
          %s388 = sand.u32 %s43, 127
          %s389 = sadd.s32 %s387, %s42
          %s390 = smul.u32 %s389, 128
          %s391 = sshra.s32 %s43, 7
          %s392 = sand.u32 %s43, 127
          %s393 = sadd.s32 %s390, %s392
          %s394 = sld [smem:[#allocation4 + %s393]]
          %s395 = smul.u32 %s394, 512
          %s396 = sshra.s32 %s395, 3
          %s397 = sand.u32 %s395, 7
          %s398 = smul.addr %s396, 4
          %s399 = scalar_lea.vmem [#allocation9], %s398
          %v400 = vld [vmem:[%s399] sm:$0xf]
          %v401 = vld [vmem:[%s399 + $0x4] sm:$0xf]
          %v402 = vld [vmem:[%s399 + $0x8] sm:$0xf]
          %v403 = vld [vmem:[%s399 + $0xc] sm:$0xf]
          %v404 = vld [vmem:[%s399 + $0x10] sm:$0xf]
          %v405 = vld [vmem:[%s399 + $0x14] sm:$0xf]
          %v406 = vld [vmem:[%s399 + $0x18] sm:$0xf]
          %v407 = vld [vmem:[%s399 + $0x1c] sm:$0xf]
          %v408 = vld [vmem:[%s399 + $0x20] sm:$0xf]
          %v409 = vld [vmem:[%s399 + $0x24] sm:$0xf]
          %v410 = vld [vmem:[%s399 + $0x28] sm:$0xf]
          %v411 = vld [vmem:[%s399 + $0x2c] sm:$0xf]
          %v412 = vld [vmem:[%s399 + $0x30] sm:$0xf]
          %v413 = vld [vmem:[%s399 + $0x34] sm:$0xf]
          %v414 = vld [vmem:[%s399 + $0x38] sm:$0xf]
          %v415 = vld [vmem:[%s399 + $0x3c] sm:$0xf]
          %v416 = vld [vmem:[%s399 + $0x40] sm:$0xf]
          %v417 = vld [vmem:[%s399 + $0x44] sm:$0xf]
          %v418 = vld [vmem:[%s399 + $0x48] sm:$0xf]
          %v419 = vld [vmem:[%s399 + $0x4c] sm:$0xf]
          %v420 = vld [vmem:[%s399 + $0x50] sm:$0xf]
          %v421 = vld [vmem:[%s399 + $0x54] sm:$0xf]
          %v422 = vld [vmem:[%s399 + $0x58] sm:$0xf]
          %v423 = vld [vmem:[%s399 + $0x5c] sm:$0xf]
          %v424 = vld [vmem:[%s399 + $0x60] sm:$0xf]
          %v425 = vld [vmem:[%s399 + $0x64] sm:$0xf]
          %v426 = vld [vmem:[%s399 + $0x68] sm:$0xf]
          %v427 = vld [vmem:[%s399 + $0x6c] sm:$0xf]
          %v428 = vld [vmem:[%s399 + $0x70] sm:$0xf]
          %v429 = vld [vmem:[%s399 + $0x74] sm:$0xf]
          %v430 = vld [vmem:[%s399 + $0x78] sm:$0xf]
          %v431 = vld [vmem:[%s399 + $0x7c] sm:$0xf]
          %v432 = vld [vmem:[%s399 + $0x80] sm:$0xf]
          %v433 = vld [vmem:[%s399 + $0x84] sm:$0xf]
          %v434 = vld [vmem:[%s399 + $0x88] sm:$0xf]
          %v435 = vld [vmem:[%s399 + $0x8c] sm:$0xf]
          %v436 = vld [vmem:[%s399 + $0x90] sm:$0xf]
          %v437 = vld [vmem:[%s399 + $0x94] sm:$0xf]
          %v438 = vld [vmem:[%s399 + $0x98] sm:$0xf]
          %v439 = vld [vmem:[%s399 + $0x9c] sm:$0xf]
          %v440 = vld [vmem:[%s399 + $0xa0] sm:$0xf]
          %v441 = vld [vmem:[%s399 + $0xa4] sm:$0xf]
          %v442 = vld [vmem:[%s399 + $0xa8] sm:$0xf]
          %v443 = vld [vmem:[%s399 + $0xac] sm:$0xf]
          %v444 = vld [vmem:[%s399 + $0xb0] sm:$0xf]
          %v445 = vld [vmem:[%s399 + $0xb4] sm:$0xf]
          %v446 = vld [vmem:[%s399 + $0xb8] sm:$0xf]
          %v447 = vld [vmem:[%s399 + $0xbc] sm:$0xf]
          %v448 = vld [vmem:[%s399 + $0xc0] sm:$0xf]
          %v449 = vld [vmem:[%s399 + $0xc4] sm:$0xf]
          %v450 = vld [vmem:[%s399 + $0xc8] sm:$0xf]
          %v451 = vld [vmem:[%s399 + $0xcc] sm:$0xf]
          %v452 = vld [vmem:[%s399 + $0xd0] sm:$0xf]
          %v453 = vld [vmem:[%s399 + $0xd4] sm:$0xf]
          %v454 = vld [vmem:[%s399 + $0xd8] sm:$0xf]
          %v455 = vld [vmem:[%s399 + $0xdc] sm:$0xf]
          %v456 = vld [vmem:[%s399 + $0xe0] sm:$0xf]
          %v457 = vld [vmem:[%s399 + $0xe4] sm:$0xf]
          %v458 = vld [vmem:[%s399 + $0xe8] sm:$0xf]
          %v459 = vld [vmem:[%s399 + $0xec] sm:$0xf]
          %v460 = vld [vmem:[%s399 + $0xf0] sm:$0xf]
          %v461 = vld [vmem:[%s399 + $0xf4] sm:$0xf]
          %v462 = vld [vmem:[%s399 + $0xf8] sm:$0xf]
          %v463 = vld [vmem:[%s399 + $0xfc] sm:$0xf]
          %v464 = vld [vmem:[#allocation2] sm:$0xff]
          %v465 = vld [vmem:[#allocation2 + $0x8] sm:$0xff]
          %v466 = vld [vmem:[#allocation2 + $0x10] sm:$0xff]
          %v467 = vld [vmem:[#allocation2 + $0x18] sm:$0xff]
          %v468 = vld [vmem:[#allocation2 + $0x20] sm:$0xff]
          %v469 = vld [vmem:[#allocation2 + $0x28] sm:$0xff]
          %v470 = vld [vmem:[#allocation2 + $0x30] sm:$0xff]
          %v471 = vld [vmem:[#allocation2 + $0x38] sm:$0xff]
          %v472 = vld [vmem:[#allocation2 + $0x40] sm:$0xff]
          %v473 = vld [vmem:[#allocation2 + $0x48] sm:$0xff]
          %v474 = vld [vmem:[#allocation2 + $0x50] sm:$0xff]
          %v475 = vld [vmem:[#allocation2 + $0x58] sm:$0xff]
          %v476 = vld [vmem:[#allocation2 + $0x60] sm:$0xff]
          %v477 = vld [vmem:[#allocation2 + $0x68] sm:$0xff]
          %v478 = vld [vmem:[#allocation2 + $0x70] sm:$0xff]
          %v479 = vld [vmem:[#allocation2 + $0x78] sm:$0xff]
          %v480 = vld [vmem:[#allocation2 + $0x80] sm:$0xff]
          %v481 = vld [vmem:[#allocation2 + $0x88] sm:$0xff]
          %v482 = vld [vmem:[#allocation2 + $0x90] sm:$0xff]
          %v483 = vld [vmem:[#allocation2 + $0x98] sm:$0xff]
          %v484 = vld [vmem:[#allocation2 + $0xa0] sm:$0xff]
          %v485 = vld [vmem:[#allocation2 + $0xa8] sm:$0xff]
          %v486 = vld [vmem:[#allocation2 + $0xb0] sm:$0xff]
          %v487 = vld [vmem:[#allocation2 + $0xb8] sm:$0xff]
          %v488 = vld [vmem:[#allocation2 + $0xc0] sm:$0xff]
          %v489 = vld [vmem:[#allocation2 + $0xc8] sm:$0xff]
          %v490 = vld [vmem:[#allocation2 + $0xd0] sm:$0xff]
          %v491 = vld [vmem:[#allocation2 + $0xd8] sm:$0xff]
          %v492 = vld [vmem:[#allocation2 + $0xe0] sm:$0xff]
          %v493 = vld [vmem:[#allocation2 + $0xe8] sm:$0xff]
          %v494 = vld [vmem:[#allocation2 + $0xf0] sm:$0xff]
          %v495 = vld [vmem:[#allocation2 + $0xf8] sm:$0xff]
          %v496 = vld [vmem:[%s284] sm:$0xff]
          %v497 = vld [vmem:[%s284 + $0x8] sm:$0xff]
          %v498 = vld [vmem:[%s284 + $0x10] sm:$0xff]
          %v499 = vld [vmem:[%s284 + $0x18] sm:$0xff]
          %v500 = vld [vmem:[%s284 + $0x20] sm:$0xff]
          %v501 = vld [vmem:[%s284 + $0x28] sm:$0xff]
          %v502 = vld [vmem:[%s284 + $0x30] sm:$0xff]
          %v503 = vld [vmem:[%s284 + $0x38] sm:$0xff]
          %v504 = vld [vmem:[%s284 + $0x40] sm:$0xff]
          %v505 = vld [vmem:[%s284 + $0x48] sm:$0xff]
          %v506 = vld [vmem:[%s284 + $0x50] sm:$0xff]
          %v507 = vld [vmem:[%s284 + $0x58] sm:$0xff]
          %v508 = vld [vmem:[%s284 + $0x60] sm:$0xff]
          %v509 = vld [vmem:[%s284 + $0x68] sm:$0xff]
          %v510 = vld [vmem:[%s284 + $0x70] sm:$0xff]
          %v511 = vld [vmem:[%s284 + $0x78] sm:$0xff]
          %v512 = vld [vmem:[%s284 + $0x80] sm:$0xff]
          %v513 = vld [vmem:[%s284 + $0x88] sm:$0xff]
          %v514 = vld [vmem:[%s284 + $0x90] sm:$0xff]
          %v515 = vld [vmem:[%s284 + $0x98] sm:$0xff]
          %v516 = vld [vmem:[%s284 + $0xa0] sm:$0xff]
          %v517 = vld [vmem:[%s284 + $0xa8] sm:$0xff]
          %v518 = vld [vmem:[%s284 + $0xb0] sm:$0xff]
          %v519 = vld [vmem:[%s284 + $0xb8] sm:$0xff]
          %v520 = vld [vmem:[%s284 + $0xc0] sm:$0xff]
          %v521 = vld [vmem:[%s284 + $0xc8] sm:$0xff]
          %v522 = vld [vmem:[%s284 + $0xd0] sm:$0xff]
          %v523 = vld [vmem:[%s284 + $0xd8] sm:$0xff]
          %v524 = vld [vmem:[%s284 + $0xe0] sm:$0xff]
          %v525 = vld [vmem:[%s284 + $0xe8] sm:$0xff]
          %v526 = vld [vmem:[%s284 + $0xf0] sm:$0xff]
          %v527 = vld [vmem:[%s284 + $0xf8] sm:$0xff]
          %v528 = vld [vmem:[%s284 + $0x100] sm:$0xff]
          %v529 = vld [vmem:[%s284 + $0x108] sm:$0xff]
          %v530 = vld [vmem:[%s284 + $0x110] sm:$0xff]
          %v531 = vld [vmem:[%s284 + $0x118] sm:$0xff]
          %v532 = vld [vmem:[%s284 + $0x120] sm:$0xff]
          %v533 = vld [vmem:[%s284 + $0x128] sm:$0xff]
          %v534 = vld [vmem:[%s284 + $0x130] sm:$0xff]
          %v535 = vld [vmem:[%s284 + $0x138] sm:$0xff]
          %v536 = vld [vmem:[%s284 + $0x140] sm:$0xff]
          %v537 = vld [vmem:[%s284 + $0x148] sm:$0xff]
          %v538 = vld [vmem:[%s284 + $0x150] sm:$0xff]
          %v539 = vld [vmem:[%s284 + $0x158] sm:$0xff]
          %v540 = vld [vmem:[%s284 + $0x160] sm:$0xff]
          %v541 = vld [vmem:[%s284 + $0x168] sm:$0xff]
          %v542 = vld [vmem:[%s284 + $0x170] sm:$0xff]
          %v543 = vld [vmem:[%s284 + $0x178] sm:$0xff]
          %v544 = vld [vmem:[%s284 + $0x180] sm:$0xff]
          %v545 = vld [vmem:[%s284 + $0x188] sm:$0xff]
          %v546 = vld [vmem:[%s284 + $0x190] sm:$0xff]
          %v547 = vld [vmem:[%s284 + $0x198] sm:$0xff]
          %v548 = vld [vmem:[%s284 + $0x1a0] sm:$0xff]
          %v549 = vld [vmem:[%s284 + $0x1a8] sm:$0xff]
          %v550 = vld [vmem:[%s284 + $0x1b0] sm:$0xff]
          %v551 = vld [vmem:[%s284 + $0x1b8] sm:$0xff]
          %v552 = vld [vmem:[%s284 + $0x1c0] sm:$0xff]
          %v553 = vld [vmem:[%s284 + $0x1c8] sm:$0xff]
          %v554 = vld [vmem:[%s284 + $0x1d0] sm:$0xff]
          %v555 = vld [vmem:[%s284 + $0x1d8] sm:$0xff]
          %v556 = vld [vmem:[%s284 + $0x1e0] sm:$0xff]
          %v557 = vld [vmem:[%s284 + $0x1e8] sm:$0xff]
          %v558 = vld [vmem:[%s284 + $0x1f0] sm:$0xff]
          %v559 = vld [vmem:[%s284 + $0x1f8] sm:$0xff]
          %v624 = vunpack.c.l.b16 %v496
          %v625 = vunpack.c.h.b16 %v496
          %v626 = vunpack.c.l.b16 %v497
          %v627 = vunpack.c.h.b16 %v497
          %v628 = vunpack.c.l.b16 %v498
          %v629 = vunpack.c.h.b16 %v498
          %v630 = vunpack.c.l.b16 %v499
          %v631 = vunpack.c.h.b16 %v499
          %v632 = vunpack.c.l.b16 %v500
          %v633 = vunpack.c.h.b16 %v500
          %v634 = vunpack.c.l.b16 %v501
          %v635 = vunpack.c.h.b16 %v501
          %v636 = vunpack.c.l.b16 %v502
          %v637 = vunpack.c.h.b16 %v502
          %v638 = vunpack.c.l.b16 %v503
          %v639 = vunpack.c.h.b16 %v503
          %v640 = vunpack.c.l.b16 %v504
          %v641 = vunpack.c.h.b16 %v504
          %v642 = vunpack.c.l.b16 %v505
          %v643 = vunpack.c.h.b16 %v505
          %v644 = vunpack.c.l.b16 %v506
          %v645 = vunpack.c.h.b16 %v506
          %v646 = vunpack.c.l.b16 %v507
          %v647 = vunpack.c.h.b16 %v507
          %v648 = vunpack.c.l.b16 %v508
          %v649 = vunpack.c.h.b16 %v508
          %v650 = vunpack.c.l.b16 %v509
          %v651 = vunpack.c.h.b16 %v509
          %v652 = vunpack.c.l.b16 %v510
          %v653 = vunpack.c.h.b16 %v510
          %v654 = vunpack.c.l.b16 %v511
          %v655 = vunpack.c.h.b16 %v511
          %v656 = vunpack.c.l.b16 %v512
          %v657 = vunpack.c.h.b16 %v512
          %v658 = vunpack.c.l.b16 %v513
          %v659 = vunpack.c.h.b16 %v513
          %v660 = vunpack.c.l.b16 %v514
          %v661 = vunpack.c.h.b16 %v514
          %v662 = vunpack.c.l.b16 %v515
          %v663 = vunpack.c.h.b16 %v515
          %v664 = vunpack.c.l.b16 %v516
          %v665 = vunpack.c.h.b16 %v516
          %v666 = vunpack.c.l.b16 %v517
          %v667 = vunpack.c.h.b16 %v517
          %v668 = vunpack.c.l.b16 %v518
          %v669 = vunpack.c.h.b16 %v518
          %v670 = vunpack.c.l.b16 %v519
          %v671 = vunpack.c.h.b16 %v519
          %v672 = vunpack.c.l.b16 %v520
          %v673 = vunpack.c.h.b16 %v520
          %v674 = vunpack.c.l.b16 %v521
          %v675 = vunpack.c.h.b16 %v521
          %v676 = vunpack.c.l.b16 %v522
          %v677 = vunpack.c.h.b16 %v522
          %v678 = vunpack.c.l.b16 %v523
          %v679 = vunpack.c.h.b16 %v523
          %v680 = vunpack.c.l.b16 %v524
          %v681 = vunpack.c.h.b16 %v524
          %v682 = vunpack.c.l.b16 %v525
          %v683 = vunpack.c.h.b16 %v525
          %v684 = vunpack.c.l.b16 %v526
          %v685 = vunpack.c.h.b16 %v526
          %v686 = vunpack.c.l.b16 %v527
          %v687 = vunpack.c.h.b16 %v527
          %v688 = vunpack.c.l.b16 %v528
          %v689 = vunpack.c.h.b16 %v528
          %v690 = vunpack.c.l.b16 %v529
          %v691 = vunpack.c.h.b16 %v529
          %v692 = vunpack.c.l.b16 %v530
          %v693 = vunpack.c.h.b16 %v530
          %v694 = vunpack.c.l.b16 %v531
          %v695 = vunpack.c.h.b16 %v531
          %v696 = vunpack.c.l.b16 %v532
          %v697 = vunpack.c.h.b16 %v532
          %v698 = vunpack.c.l.b16 %v533
          %v699 = vunpack.c.h.b16 %v533
          %v700 = vunpack.c.l.b16 %v534
          %v701 = vunpack.c.h.b16 %v534
          %v702 = vunpack.c.l.b16 %v535
          %v703 = vunpack.c.h.b16 %v535
          %v704 = vunpack.c.l.b16 %v536
          %v705 = vunpack.c.h.b16 %v536
          %v706 = vunpack.c.l.b16 %v537
          %v707 = vunpack.c.h.b16 %v537
          %v708 = vunpack.c.l.b16 %v538
          %v709 = vunpack.c.h.b16 %v538
          %v710 = vunpack.c.l.b16 %v539
          %v711 = vunpack.c.h.b16 %v539
          %v712 = vunpack.c.l.b16 %v540
          %v713 = vunpack.c.h.b16 %v540
          %v714 = vunpack.c.l.b16 %v541
          %v715 = vunpack.c.h.b16 %v541
          %v716 = vunpack.c.l.b16 %v542
          %v717 = vunpack.c.h.b16 %v542
          %v718 = vunpack.c.l.b16 %v543
          %v719 = vunpack.c.h.b16 %v543
          %v720 = vunpack.c.l.b16 %v544
          %v721 = vunpack.c.h.b16 %v544
          %v722 = vunpack.c.l.b16 %v545
          %v723 = vunpack.c.h.b16 %v545
          %v724 = vunpack.c.l.b16 %v546
          %v725 = vunpack.c.h.b16 %v546
          %v726 = vunpack.c.l.b16 %v547
          %v727 = vunpack.c.h.b16 %v547
          %v728 = vunpack.c.l.b16 %v548
          %v729 = vunpack.c.h.b16 %v548
          %v730 = vunpack.c.l.b16 %v549
          %v731 = vunpack.c.h.b16 %v549
          %v732 = vunpack.c.l.b16 %v550
          %v733 = vunpack.c.h.b16 %v550
          %v734 = vunpack.c.l.b16 %v551
          %v735 = vunpack.c.h.b16 %v551
          %v736 = vunpack.c.l.b16 %v552
          %v737 = vunpack.c.h.b16 %v552
          %v738 = vunpack.c.l.b16 %v553
          %v739 = vunpack.c.h.b16 %v553
          %v740 = vunpack.c.l.b16 %v554
          %v741 = vunpack.c.h.b16 %v554
          %v742 = vunpack.c.l.b16 %v555
          %v743 = vunpack.c.h.b16 %v555
          %v744 = vunpack.c.l.b16 %v556
          %v745 = vunpack.c.h.b16 %v556
          %v746 = vunpack.c.l.b16 %v557
          %v747 = vunpack.c.h.b16 %v557
          %v748 = vunpack.c.l.b16 %v558
          %v749 = vunpack.c.h.b16 %v558
          %v750 = vunpack.c.l.b16 %v559
          %v751 = vunpack.c.h.b16 %v559
          %v752 = vpack.c.b16 %v628, %v624
          %v753 = vpack.c.b16 %v629, %v625
          %v754 = vpack.c.b16 %v630, %v626
          %v755 = vpack.c.b16 %v631, %v627
          %v756 = vpack.c.b16 %v636, %v632
          %v757 = vpack.c.b16 %v637, %v633
          %v758 = vpack.c.b16 %v638, %v634
          %v759 = vpack.c.b16 %v639, %v635
          %v760 = vpack.c.b16 %v644, %v640
          %v761 = vpack.c.b16 %v645, %v641
          %v762 = vpack.c.b16 %v646, %v642
          %v763 = vpack.c.b16 %v647, %v643
          %v764 = vpack.c.b16 %v652, %v648
          %v765 = vpack.c.b16 %v653, %v649
          %v766 = vpack.c.b16 %v654, %v650
          %v767 = vpack.c.b16 %v655, %v651
          %v768 = vpack.c.b16 %v660, %v656
          %v769 = vpack.c.b16 %v661, %v657
          %v770 = vpack.c.b16 %v662, %v658
          %v771 = vpack.c.b16 %v663, %v659
          %v772 = vpack.c.b16 %v668, %v664
          %v773 = vpack.c.b16 %v669, %v665
          %v774 = vpack.c.b16 %v670, %v666
          %v775 = vpack.c.b16 %v671, %v667
          %v776 = vpack.c.b16 %v676, %v672
          %v777 = vpack.c.b16 %v677, %v673
          %v778 = vpack.c.b16 %v678, %v674
          %v779 = vpack.c.b16 %v679, %v675
          %v780 = vpack.c.b16 %v684, %v680
          %v781 = vpack.c.b16 %v685, %v681
          %v782 = vpack.c.b16 %v686, %v682
          %v783 = vpack.c.b16 %v687, %v683
          %v784 = vpack.c.b16 %v692, %v688
          %v785 = vpack.c.b16 %v693, %v689
          %v786 = vpack.c.b16 %v694, %v690
          %v787 = vpack.c.b16 %v695, %v691
          %v788 = vpack.c.b16 %v700, %v696
          %v789 = vpack.c.b16 %v701, %v697
          %v790 = vpack.c.b16 %v702, %v698
          %v791 = vpack.c.b16 %v703, %v699
          %v792 = vpack.c.b16 %v708, %v704
          %v793 = vpack.c.b16 %v709, %v705
          %v794 = vpack.c.b16 %v710, %v706
          %v795 = vpack.c.b16 %v711, %v707
          %v796 = vpack.c.b16 %v716, %v712
          %v797 = vpack.c.b16 %v717, %v713
          %v798 = vpack.c.b16 %v718, %v714
          %v799 = vpack.c.b16 %v719, %v715
          %v800 = vpack.c.b16 %v724, %v720
          %v801 = vpack.c.b16 %v725, %v721
          %v802 = vpack.c.b16 %v726, %v722
          %v803 = vpack.c.b16 %v727, %v723
          %v804 = vpack.c.b16 %v732, %v728
          %v805 = vpack.c.b16 %v733, %v729
          %v806 = vpack.c.b16 %v734, %v730
          %v807 = vpack.c.b16 %v735, %v731
          %v808 = vpack.c.b16 %v740, %v736
          %v809 = vpack.c.b16 %v741, %v737
          %v810 = vpack.c.b16 %v742, %v738
          %v811 = vpack.c.b16 %v743, %v739
          %v812 = vpack.c.b16 %v748, %v744
          %v813 = vpack.c.b16 %v749, %v745
          %v814 = vpack.c.b16 %v750, %v746
          %v815 = vpack.c.b16 %v751, %v747
          %v944 = vunpack.c.l.b16 %v400
          %v945 = vunpack.c.l.b16 %v401
          %v946 = vunpack.c.l.b16 %v402
          %v947 = vunpack.c.l.b16 %v403
          %v948 = vunpack.c.l.b16 %v404
          %v949 = vunpack.c.l.b16 %v405
          %v950 = vunpack.c.l.b16 %v406
          %v951 = vunpack.c.l.b16 %v407
          %v952 = vunpack.c.l.b16 %v408
          %v953 = vunpack.c.l.b16 %v409
          %v954 = vunpack.c.l.b16 %v410
          %v955 = vunpack.c.l.b16 %v411
          %v956 = vunpack.c.l.b16 %v412
          %v957 = vunpack.c.l.b16 %v413
          %v958 = vunpack.c.l.b16 %v414
          %v959 = vunpack.c.l.b16 %v415
          %v960 = vunpack.c.l.b16 %v416
          %v961 = vunpack.c.l.b16 %v417
          %v962 = vunpack.c.l.b16 %v418
          %v963 = vunpack.c.l.b16 %v419
          %v964 = vunpack.c.l.b16 %v420
          %v965 = vunpack.c.l.b16 %v421
          %v966 = vunpack.c.l.b16 %v422
          %v967 = vunpack.c.l.b16 %v423
          %v968 = vunpack.c.l.b16 %v424
          %v969 = vunpack.c.l.b16 %v425
          %v970 = vunpack.c.l.b16 %v426
          %v971 = vunpack.c.l.b16 %v427
          %v972 = vunpack.c.l.b16 %v428
          %v973 = vunpack.c.l.b16 %v429
          %v974 = vunpack.c.l.b16 %v430
          %v975 = vunpack.c.l.b16 %v431
          %v976 = vunpack.c.l.b16 %v432
          %v977 = vunpack.c.l.b16 %v433
          %v978 = vunpack.c.l.b16 %v434
          %v979 = vunpack.c.l.b16 %v435
          %v980 = vunpack.c.l.b16 %v436
          %v981 = vunpack.c.l.b16 %v437
          %v982 = vunpack.c.l.b16 %v438
          %v983 = vunpack.c.l.b16 %v439
          %v984 = vunpack.c.l.b16 %v440
          %v985 = vunpack.c.l.b16 %v441
          %v986 = vunpack.c.l.b16 %v442
          %v987 = vunpack.c.l.b16 %v443
          %v988 = vunpack.c.l.b16 %v444
          %v989 = vunpack.c.l.b16 %v445
          %v990 = vunpack.c.l.b16 %v446
          %v991 = vunpack.c.l.b16 %v447
          %v992 = vunpack.c.l.b16 %v448
          %v993 = vunpack.c.l.b16 %v449
          %v994 = vunpack.c.l.b16 %v450
          %v995 = vunpack.c.l.b16 %v451
          %v996 = vunpack.c.l.b16 %v452
          %v997 = vunpack.c.l.b16 %v453
          %v998 = vunpack.c.l.b16 %v454
          %v999 = vunpack.c.l.b16 %v455
          %v1000 = vunpack.c.l.b16 %v456
          %v1001 = vunpack.c.l.b16 %v457
          %v1002 = vunpack.c.l.b16 %v458
          %v1003 = vunpack.c.l.b16 %v459
          %v1004 = vunpack.c.l.b16 %v460
          %v1005 = vunpack.c.l.b16 %v461
          %v1006 = vunpack.c.l.b16 %v462
          %v1007 = vunpack.c.l.b16 %v463
          %v1008 = vpack.c.b16 %v945, %v944
          %v1009 = vpack.c.b16 %v947, %v946
          %v1010 = vpack.c.b16 %v949, %v948
          %v1011 = vpack.c.b16 %v951, %v950
          %v1012 = vpack.c.b16 %v953, %v952
          %v1013 = vpack.c.b16 %v955, %v954
          %v1014 = vpack.c.b16 %v957, %v956
          %v1015 = vpack.c.b16 %v959, %v958
          %v1016 = vpack.c.b16 %v961, %v960
          %v1017 = vpack.c.b16 %v963, %v962
          %v1018 = vpack.c.b16 %v965, %v964
          %v1019 = vpack.c.b16 %v967, %v966
          %v1020 = vpack.c.b16 %v969, %v968
          %v1021 = vpack.c.b16 %v971, %v970
          %v1022 = vpack.c.b16 %v973, %v972
          %v1023 = vpack.c.b16 %v975, %v974
          %v1024 = vpack.c.b16 %v977, %v976
          %v1025 = vpack.c.b16 %v979, %v978
          %v1026 = vpack.c.b16 %v981, %v980
          %v1027 = vpack.c.b16 %v983, %v982
          %v1028 = vpack.c.b16 %v985, %v984
          %v1029 = vpack.c.b16 %v987, %v986
          %v1030 = vpack.c.b16 %v989, %v988
          %v1031 = vpack.c.b16 %v991, %v990
          %v1032 = vpack.c.b16 %v993, %v992
          %v1033 = vpack.c.b16 %v995, %v994
          %v1034 = vpack.c.b16 %v997, %v996
          %v1035 = vpack.c.b16 %v999, %v998
          %v1036 = vpack.c.b16 %v1001, %v1000
          %v1037 = vpack.c.b16 %v1003, %v1002
          %v1038 = vpack.c.b16 %v1005, %v1004
          %v1039 = vpack.c.b16 %v1007, %v1006
          %1072 = vmatprep.subr.bf16.mxu0 0
          %1073 = vmatpush1.bf16.msra.mxu0 %v1008
          %1074 = vmatprep.subr.bf16.mxu0 0
          %1075 = vmatpush1.bf16.msra.mxu0 %v1009
          %1076 = vmatprep.subr.bf16.mxu0 0
          %1077 = vmatpush1.bf16.msra.mxu0 %v1010
          %1078 = vmatprep.subr.bf16.mxu0 0
          %1079 = vmatpush1.bf16.msra.mxu0 %v1011
          %1080 = vmatprep.subr.bf16.mxu0 0
          %1081 = vmatpush1.bf16.msra.mxu0 %v1012
          %1082 = vmatprep.subr.bf16.mxu0 0
          %1083 = vmatpush1.bf16.msra.mxu0 %v1013
          %1084 = vmatprep.subr.bf16.mxu0 0
          %1085 = vmatpush1.bf16.msra.mxu0 %v1014
          %1086 = vmatprep.subr.bf16.mxu0 0
          %1087 = vmatpush1.bf16.msra.mxu0 %v1015
          %1088 = vmatprep.subr.bf16.mxu0 0
          %1089 = vmatpush1.bf16.msra.mxu0 %v1016
          %1090 = vmatprep.subr.bf16.mxu0 0
          %1091 = vmatpush1.bf16.msra.mxu0 %v1017
          %1092 = vmatprep.subr.bf16.mxu0 0
          %1093 = vmatpush1.bf16.msra.mxu0 %v1018
          %1094 = vmatprep.subr.bf16.mxu0 0
          %1095 = vmatpush1.bf16.msra.mxu0 %v1019
          %1096 = vmatprep.subr.bf16.mxu0 0
          %1097 = vmatpush1.bf16.msra.mxu0 %v1020
          %1098 = vmatprep.subr.bf16.mxu0 0
          %1099 = vmatpush1.bf16.msra.mxu0 %v1021
          %1100 = vmatprep.subr.bf16.mxu0 0
          %1101 = vmatpush1.bf16.msra.mxu0 %v1022
          %1102 = vmatprep.subr.bf16.mxu0 0
          %1103 = vmatpush1.bf16.msra.mxu0 %v1023
          %1104 = vmatprep.mubr.bf16.mxu0 %v753
          %1105 = vmatmul.mubr.bf16.gmra.mrb[0].mxu0 %v752
          %v1106 = vpop.f32.mrb[0].mxu0
          %v1107 = vadd.f32 0.0, %v1106
          %v1108 = vpop.f32.mrb[0].mxu0
          %v1109 = vpop.f32.mrb[0].mxu0
          %v1110 = vadd.f32 0.0, %v1109
          %v1111 = vpop.f32.mrb[0].mxu0
          %1112 = vmatprep.mubr.bf16.mxu0 %v757
          %1113 = vmatmul.mubr.bf16.gmra.mrb[0].mxu0 %v756
          %v1114 = vpop.f32.mrb[0].mxu0
          %v1115 = vadd.f32 0.0, %v1114
          %v1116 = vpop.f32.mrb[0].mxu0
          %v1117 = vpop.f32.mrb[0].mxu0
          %v1118 = vadd.f32 0.0, %v1117
          %v1119 = vpop.f32.mrb[0].mxu0
          %1120 = vmatprep.mubr.bf16.mxu0 %v761
          %1121 = vmatmul.mubr.bf16.gmra.mrb[0].mxu0 %v760
          %v1122 = vpop.f32.mrb[0].mxu0
          %v1123 = vadd.f32 0.0, %v1122
          %v1124 = vpop.f32.mrb[0].mxu0
          %v1125 = vpop.f32.mrb[0].mxu0
          %v1126 = vadd.f32 0.0, %v1125
          %v1127 = vpop.f32.mrb[0].mxu0
          %1128 = vmatprep.mubr.bf16.mxu0 %v765
          %1129 = vmatmul.mubr.bf16.gmra.mrb[0].mxu0 %v764
          %v1130 = vpop.f32.mrb[0].mxu0
          %v1131 = vadd.f32 0.0, %v1130
          %v1132 = vpop.f32.mrb[0].mxu0
          %v1133 = vpop.f32.mrb[0].mxu0
          %v1134 = vadd.f32 0.0, %v1133
          %v1135 = vpop.f32.mrb[0].mxu0
          %1136 = vmatprep.mubr.bf16.mxu0 %v769
          %1137 = vmatmul.mubr.bf16.gmra.mrb[0].mxu0 %v768
          %v1138 = vpop.f32.mrb[0].mxu0
          %v1139 = vadd.f32 0.0, %v1138
          %v1140 = vpop.f32.mrb[0].mxu0
          %v1141 = vpop.f32.mrb[0].mxu0
          %v1142 = vadd.f32 0.0, %v1141
          %v1143 = vpop.f32.mrb[0].mxu0
          %1144 = vmatprep.mubr.bf16.mxu0 %v773
          %1145 = vmatmul.mubr.bf16.gmra.mrb[0].mxu0 %v772
          %v1146 = vpop.f32.mrb[0].mxu0
          %v1147 = vadd.f32 0.0, %v1146
          %v1148 = vpop.f32.mrb[0].mxu0
          %v1149 = vpop.f32.mrb[0].mxu0
          %v1150 = vadd.f32 0.0, %v1149
          %v1151 = vpop.f32.mrb[0].mxu0
          %1152 = vmatprep.mubr.bf16.mxu0 %v777
          %1153 = vmatmul.mubr.bf16.gmra.mrb[0].mxu0 %v776
          %v1154 = vpop.f32.mrb[0].mxu0
          %v1155 = vadd.f32 0.0, %v1154
          %v1156 = vpop.f32.mrb[0].mxu0
          %v1157 = vpop.f32.mrb[0].mxu0
          %v1158 = vadd.f32 0.0, %v1157
          %v1159 = vpop.f32.mrb[0].mxu0
          %1160 = vmatprep.mubr.bf16.mxu0 %v781
          %1161 = vmatmul.mubr.bf16.gmra.mrb[0].mxu0 %v780
          %v1162 = vpop.f32.mrb[0].mxu0
          %v1163 = vadd.f32 0.0, %v1162
          %v1164 = vpop.f32.mrb[0].mxu0
          %v1165 = vpop.f32.mrb[0].mxu0
          %v1166 = vadd.f32 0.0, %v1165
          %v1167 = vpop.f32.mrb[0].mxu0
          %1168 = vmatprep.mubr.bf16.mxu0 %v785
          %1169 = vmatmul.mubr.bf16.gmra.mrb[0].mxu0 %v784
          %v1170 = vpop.f32.mrb[0].mxu0
          %v1171 = vadd.f32 0.0, %v1170
          %v1172 = vpop.f32.mrb[0].mxu0
          %v1173 = vpop.f32.mrb[0].mxu0
          %v1174 = vadd.f32 0.0, %v1173
          %v1175 = vpop.f32.mrb[0].mxu0
          %1176 = vmatprep.mubr.bf16.mxu0 %v789
          %1177 = vmatmul.mubr.bf16.gmra.mrb[0].mxu0 %v788
          %v1178 = vpop.f32.mrb[0].mxu0
          %v1179 = vadd.f32 0.0, %v1178
          %v1180 = vpop.f32.mrb[0].mxu0
          %v1181 = vpop.f32.mrb[0].mxu0
          %v1182 = vadd.f32 0.0, %v1181
          %v1183 = vpop.f32.mrb[0].mxu0
          %1184 = vmatprep.mubr.bf16.mxu0 %v793
          %1185 = vmatmul.mubr.bf16.gmra.mrb[0].mxu0 %v792
          %v1186 = vpop.f32.mrb[0].mxu0
          %v1187 = vadd.f32 0.0, %v1186
          %v1188 = vpop.f32.mrb[0].mxu0
          %v1189 = vpop.f32.mrb[0].mxu0
          %v1190 = vadd.f32 0.0, %v1189
          %v1191 = vpop.f32.mrb[0].mxu0
          %1192 = vmatprep.mubr.bf16.mxu0 %v797
          %1193 = vmatmul.mubr.bf16.gmra.mrb[0].mxu0 %v796
          %v1194 = vpop.f32.mrb[0].mxu0
          %v1195 = vadd.f32 0.0, %v1194
          %v1196 = vpop.f32.mrb[0].mxu0
          %v1197 = vpop.f32.mrb[0].mxu0
          %v1198 = vadd.f32 0.0, %v1197
          %v1199 = vpop.f32.mrb[0].mxu0
          %1200 = vmatprep.mubr.bf16.mxu0 %v801
          %1201 = vmatmul.mubr.bf16.gmra.mrb[0].mxu0 %v800
          %v1202 = vpop.f32.mrb[0].mxu0
          %v1203 = vadd.f32 0.0, %v1202
          %v1204 = vpop.f32.mrb[0].mxu0
          %v1205 = vpop.f32.mrb[0].mxu0
          %v1206 = vadd.f32 0.0, %v1205
          %v1207 = vpop.f32.mrb[0].mxu0
          %1208 = vmatprep.mubr.bf16.mxu0 %v805
          %1209 = vmatmul.mubr.bf16.gmra.mrb[0].mxu0 %v804
          %v1210 = vpop.f32.mrb[0].mxu0
          %v1211 = vadd.f32 0.0, %v1210
          %v1212 = vpop.f32.mrb[0].mxu0
          %v1213 = vpop.f32.mrb[0].mxu0
          %v1214 = vadd.f32 0.0, %v1213
          %v1215 = vpop.f32.mrb[0].mxu0
          %1216 = vmatprep.mubr.bf16.mxu0 %v809
          %1217 = vmatmul.mubr.bf16.gmra.mrb[0].mxu0 %v808
          %v1218 = vpop.f32.mrb[0].mxu0
          %v1219 = vadd.f32 0.0, %v1218
          %v1220 = vpop.f32.mrb[0].mxu0
          %v1221 = vpop.f32.mrb[0].mxu0
          %v1222 = vadd.f32 0.0, %v1221
          %v1223 = vpop.f32.mrb[0].mxu0
          %1224 = vmatprep.mubr.bf16.mxu0 %v813
          %1225 = vmatmul.mubr.bf16.gmra.mrb[0].mxu0 %v812
          %v1226 = vpop.f32.mrb[0].mxu0
          %v1227 = vadd.f32 0.0, %v1226
          %v1228 = vpop.f32.mrb[0].mxu0
          %v1229 = vpop.f32.mrb[0].mxu0
          %v1230 = vadd.f32 0.0, %v1229
          %v1231 = vpop.f32.mrb[0].mxu0
          %1232 = vdwg.mxu0
          %1233 = vmatprep.subr.bf16.mxu0 0
          %1234 = vmatpush1.bf16.msra.mxu0 %v1024
          %1235 = vmatprep.subr.bf16.mxu0 0
          %1236 = vmatpush1.bf16.msra.mxu0 %v1025
          %1237 = vmatprep.subr.bf16.mxu0 0
          %1238 = vmatpush1.bf16.msra.mxu0 %v1026
          %1239 = vmatprep.subr.bf16.mxu0 0
          %1240 = vmatpush1.bf16.msra.mxu0 %v1027
          %1241 = vmatprep.subr.bf16.mxu0 0
          %1242 = vmatpush1.bf16.msra.mxu0 %v1028
          %1243 = vmatprep.subr.bf16.mxu0 0
          %1244 = vmatpush1.bf16.msra.mxu0 %v1029
          %1245 = vmatprep.subr.bf16.mxu0 0
          %1246 = vmatpush1.bf16.msra.mxu0 %v1030
          %1247 = vmatprep.subr.bf16.mxu0 0
          %1248 = vmatpush1.bf16.msra.mxu0 %v1031
          %1249 = vmatprep.subr.bf16.mxu0 0
          %1250 = vmatpush1.bf16.msra.mxu0 %v1032
          %1251 = vmatprep.subr.bf16.mxu0 0
          %1252 = vmatpush1.bf16.msra.mxu0 %v1033
          %1253 = vmatprep.subr.bf16.mxu0 0
          %1254 = vmatpush1.bf16.msra.mxu0 %v1034
          %1255 = vmatprep.subr.bf16.mxu0 0
          %1256 = vmatpush1.bf16.msra.mxu0 %v1035
          %1257 = vmatprep.subr.bf16.mxu0 0
          %1258 = vmatpush1.bf16.msra.mxu0 %v1036
          %1259 = vmatprep.subr.bf16.mxu0 0
          %1260 = vmatpush1.bf16.msra.mxu0 %v1037
          %1261 = vmatprep.subr.bf16.mxu0 0
          %1262 = vmatpush1.bf16.msra.mxu0 %v1038
          %1263 = vmatprep.subr.bf16.mxu0 0
          %1264 = vmatpush1.bf16.msra.mxu0 %v1039
          %1265 = vmatprep.mubr.bf16.mxu0 %v755
          %1266 = vmatmul.mubr.bf16.gmra.mrb[0].mxu0 %v754
          %v1267 = vpop.f32.mrb[0].mxu0
          %v1268 = vadd.f32 %v1107, %v1267
          %v1269 = vpop.f32.mrb[0].mxu0
          %v1270 = vpop.f32.mrb[0].mxu0
          %v1271 = vadd.f32 %v1110, %v1270
          %v1272 = vpop.f32.mrb[0].mxu0
          %1273 = vmatprep.mubr.bf16.mxu0 %v759
          %1274 = vmatmul.mubr.bf16.gmra.mrb[0].mxu0 %v758
          %v1275 = vpop.f32.mrb[0].mxu0
          %v1276 = vadd.f32 %v1115, %v1275
          %v1277 = vpop.f32.mrb[0].mxu0
          %v1278 = vpop.f32.mrb[0].mxu0
          %v1279 = vadd.f32 %v1118, %v1278
          %v1280 = vpop.f32.mrb[0].mxu0
          %1281 = vmatprep.mubr.bf16.mxu0 %v763
          %1282 = vmatmul.mubr.bf16.gmra.mrb[0].mxu0 %v762
          %v1283 = vpop.f32.mrb[0].mxu0
          %v1284 = vadd.f32 %v1123, %v1283
          %v1285 = vpop.f32.mrb[0].mxu0
          %v1286 = vpop.f32.mrb[0].mxu0
          %v1287 = vadd.f32 %v1126, %v1286
          %v1288 = vpop.f32.mrb[0].mxu0
          %1289 = vmatprep.mubr.bf16.mxu0 %v767
          %1290 = vmatmul.mubr.bf16.gmra.mrb[0].mxu0 %v766
          %v1291 = vpop.f32.mrb[0].mxu0
          %v1292 = vadd.f32 %v1131, %v1291
          %v1293 = vpop.f32.mrb[0].mxu0
          %v1294 = vpop.f32.mrb[0].mxu0
          %v1295 = vadd.f32 %v1134, %v1294
          %v1296 = vpop.f32.mrb[0].mxu0
          %1297 = vmatprep.mubr.bf16.mxu0 %v771
          %1298 = vmatmul.mubr.bf16.gmra.mrb[0].mxu0 %v770
          %v1299 = vpop.f32.mrb[0].mxu0
          %v1300 = vadd.f32 %v1139, %v1299
          %v1301 = vpop.f32.mrb[0].mxu0
          %v1302 = vpop.f32.mrb[0].mxu0
          %v1303 = vadd.f32 %v1142, %v1302
          %v1304 = vpop.f32.mrb[0].mxu0
          %1305 = vmatprep.mubr.bf16.mxu0 %v775
          %1306 = vmatmul.mubr.bf16.gmra.mrb[0].mxu0 %v774
          %v1307 = vpop.f32.mrb[0].mxu0
          %v1308 = vadd.f32 %v1147, %v1307
          %v1309 = vpop.f32.mrb[0].mxu0
          %v1310 = vpop.f32.mrb[0].mxu0
          %v1311 = vadd.f32 %v1150, %v1310
          %v1312 = vpop.f32.mrb[0].mxu0
          %1313 = vmatprep.mubr.bf16.mxu0 %v779
          %1314 = vmatmul.mubr.bf16.gmra.mrb[0].mxu0 %v778
          %v1315 = vpop.f32.mrb[0].mxu0
          %v1316 = vadd.f32 %v1155, %v1315
          %v1317 = vpop.f32.mrb[0].mxu0
          %v1318 = vpop.f32.mrb[0].mxu0
          %v1319 = vadd.f32 %v1158, %v1318
          %v1320 = vpop.f32.mrb[0].mxu0
          %1321 = vmatprep.mubr.bf16.mxu0 %v783
          %1322 = vmatmul.mubr.bf16.gmra.mrb[0].mxu0 %v782
          %v1323 = vpop.f32.mrb[0].mxu0
          %v1324 = vadd.f32 %v1163, %v1323
          %v1325 = vpop.f32.mrb[0].mxu0
          %v1326 = vpop.f32.mrb[0].mxu0
          %v1327 = vadd.f32 %v1166, %v1326
          %v1328 = vpop.f32.mrb[0].mxu0
          %1329 = vmatprep.mubr.bf16.mxu0 %v787
          %1330 = vmatmul.mubr.bf16.gmra.mrb[0].mxu0 %v786
          %v1331 = vpop.f32.mrb[0].mxu0
          %v1332 = vadd.f32 %v1171, %v1331
          %v1333 = vpop.f32.mrb[0].mxu0
          %v1334 = vpop.f32.mrb[0].mxu0
          %v1335 = vadd.f32 %v1174, %v1334
          %v1336 = vpop.f32.mrb[0].mxu0
          %1337 = vmatprep.mubr.bf16.mxu0 %v791
          %1338 = vmatmul.mubr.bf16.gmra.mrb[0].mxu0 %v790
          %v1339 = vpop.f32.mrb[0].mxu0
          %v1340 = vadd.f32 %v1179, %v1339
          %v1341 = vpop.f32.mrb[0].mxu0
          %v1342 = vpop.f32.mrb[0].mxu0
          %v1343 = vadd.f32 %v1182, %v1342
          %v1344 = vpop.f32.mrb[0].mxu0
          %1345 = vmatprep.mubr.bf16.mxu0 %v795
          %1346 = vmatmul.mubr.bf16.gmra.mrb[0].mxu0 %v794
          %v1347 = vpop.f32.mrb[0].mxu0
          %v1348 = vadd.f32 %v1187, %v1347
          %v1349 = vpop.f32.mrb[0].mxu0
          %v1350 = vpop.f32.mrb[0].mxu0
          %v1351 = vadd.f32 %v1190, %v1350
          %v1352 = vpop.f32.mrb[0].mxu0
          %1353 = vmatprep.mubr.bf16.mxu0 %v799
          %1354 = vmatmul.mubr.bf16.gmra.mrb[0].mxu0 %v798
          %v1355 = vpop.f32.mrb[0].mxu0
          %v1356 = vadd.f32 %v1195, %v1355
          %v1357 = vpop.f32.mrb[0].mxu0
          %v1358 = vpop.f32.mrb[0].mxu0
          %v1359 = vadd.f32 %v1198, %v1358
          %v1360 = vpop.f32.mrb[0].mxu0
          %1361 = vmatprep.mubr.bf16.mxu0 %v803
          %1362 = vmatmul.mubr.bf16.gmra.mrb[0].mxu0 %v802
          %v1363 = vpop.f32.mrb[0].mxu0
          %v1364 = vadd.f32 %v1203, %v1363
          %v1365 = vpop.f32.mrb[0].mxu0
          %v1366 = vpop.f32.mrb[0].mxu0
          %v1367 = vadd.f32 %v1206, %v1366
          %v1368 = vpop.f32.mrb[0].mxu0
          %1369 = vmatprep.mubr.bf16.mxu0 %v807
          %1370 = vmatmul.mubr.bf16.gmra.mrb[0].mxu0 %v806
          %v1371 = vpop.f32.mrb[0].mxu0
          %v1372 = vadd.f32 %v1211, %v1371
          %v1373 = vpop.f32.mrb[0].mxu0
          %v1374 = vpop.f32.mrb[0].mxu0
          %v1375 = vadd.f32 %v1214, %v1374
          %v1376 = vpop.f32.mrb[0].mxu0
          %1377 = vmatprep.mubr.bf16.mxu0 %v811
          %1378 = vmatmul.mubr.bf16.gmra.mrb[0].mxu0 %v810
          %v1379 = vpop.f32.mrb[0].mxu0
          %v1380 = vadd.f32 %v1219, %v1379
          %v1381 = vpop.f32.mrb[0].mxu0
          %v1382 = vpop.f32.mrb[0].mxu0
          %v1383 = vadd.f32 %v1222, %v1382
          %v1384 = vpop.f32.mrb[0].mxu0
          %1385 = vmatprep.mubr.bf16.mxu0 %v815
          %1386 = vmatmul.mubr.bf16.gmra.mrb[0].mxu0 %v814
          %v1387 = vpop.f32.mrb[0].mxu0
          %v1388 = vadd.f32 %v1227, %v1387
          %v1389 = vpop.f32.mrb[0].mxu0
          %v1390 = vpop.f32.mrb[0].mxu0
          %v1391 = vadd.f32 %v1230, %v1390
          %v1392 = vpop.f32.mrb[0].mxu0
          %1393 = vdwg.mxu0
          %v1394 = vadd.f32 %v464, %v1268
          %v1395 = vadd.f32 %v465, %v1271
          %v1396 = vadd.f32 %v466, %v1276
          %v1397 = vadd.f32 %v467, %v1279
          %v1398 = vadd.f32 %v468, %v1284
          %v1399 = vadd.f32 %v469, %v1287
          %v1400 = vadd.f32 %v470, %v1292
          %v1401 = vadd.f32 %v471, %v1295
          %v1402 = vadd.f32 %v472, %v1300
          %v1403 = vadd.f32 %v473, %v1303
          %v1404 = vadd.f32 %v474, %v1308
          %v1405 = vadd.f32 %v475, %v1311
          %v1406 = vadd.f32 %v476, %v1316
          %v1407 = vadd.f32 %v477, %v1319
          %v1408 = vadd.f32 %v478, %v1324
          %v1409 = vadd.f32 %v479, %v1327
          %v1410 = vadd.f32 %v480, %v1332
          %v1411 = vadd.f32 %v481, %v1335
          %v1412 = vadd.f32 %v482, %v1340
          %v1413 = vadd.f32 %v483, %v1343
          %v1414 = vadd.f32 %v484, %v1348
          %v1415 = vadd.f32 %v485, %v1351
          %v1416 = vadd.f32 %v486, %v1356
          %v1417 = vadd.f32 %v487, %v1359
          %v1418 = vadd.f32 %v488, %v1364
          %v1419 = vadd.f32 %v489, %v1367
          %v1420 = vadd.f32 %v490, %v1372
          %v1421 = vadd.f32 %v491, %v1375
          %v1422 = vadd.f32 %v492, %v1380
          %v1423 = vadd.f32 %v493, %v1383
          %v1424 = vadd.f32 %v494, %v1388
          %v1425 = vadd.f32 %v495, %v1391
          %1426 = vst [vmem:[#allocation2] sm:$0xff] %v1394
          %1427 = vst [vmem:[#allocation2 + $0x8] sm:$0xff] %v1395
          %1428 = vst [vmem:[#allocation2 + $0x10] sm:$0xff] %v1396
          %1429 = vst [vmem:[#allocation2 + $0x18] sm:$0xff] %v1397
          %1430 = vst [vmem:[#allocation2 + $0x20] sm:$0xff] %v1398
          %1431 = vst [vmem:[#allocation2 + $0x28] sm:$0xff] %v1399
          %1432 = vst [vmem:[#allocation2 + $0x30] sm:$0xff] %v1400
          %1433 = vst [vmem:[#allocation2 + $0x38] sm:$0xff] %v1401
          %1434 = vst [vmem:[#allocation2 + $0x40] sm:$0xff] %v1402
          %1435 = vst [vmem:[#allocation2 + $0x48] sm:$0xff] %v1403
          %1436 = vst [vmem:[#allocation2 + $0x50] sm:$0xff] %v1404
          %1437 = vst [vmem:[#allocation2 + $0x58] sm:$0xff] %v1405
          %1438 = vst [vmem:[#allocation2 + $0x60] sm:$0xff] %v1406
          %1439 = vst [vmem:[#allocation2 + $0x68] sm:$0xff] %v1407
          %1440 = vst [vmem:[#allocation2 + $0x70] sm:$0xff] %v1408
          %1441 = vst [vmem:[#allocation2 + $0x78] sm:$0xff] %v1409
          %1442 = vst [vmem:[#allocation2 + $0x80] sm:$0xff] %v1410
          %1443 = vst [vmem:[#allocation2 + $0x88] sm:$0xff] %v1411
          %1444 = vst [vmem:[#allocation2 + $0x90] sm:$0xff] %v1412
          %1445 = vst [vmem:[#allocation2 + $0x98] sm:$0xff] %v1413
          %1446 = vst [vmem:[#allocation2 + $0xa0] sm:$0xff] %v1414
          %1447 = vst [vmem:[#allocation2 + $0xa8] sm:$0xff] %v1415
          %1448 = vst [vmem:[#allocation2 + $0xb0] sm:$0xff] %v1416
          %1449 = vst [vmem:[#allocation2 + $0xb8] sm:$0xff] %v1417
          %1450 = vst [vmem:[#allocation2 + $0xc0] sm:$0xff] %v1418
          %1451 = vst [vmem:[#allocation2 + $0xc8] sm:$0xff] %v1419
          %1452 = vst [vmem:[#allocation2 + $0xd0] sm:$0xff] %v1420
          %1453 = vst [vmem:[#allocation2 + $0xd8] sm:$0xff] %v1421
          %1454 = vst [vmem:[#allocation2 + $0xe0] sm:$0xff] %v1422
          %1455 = vst [vmem:[#allocation2 + $0xe8] sm:$0xff] %v1423
          %1456 = vst [vmem:[#allocation2 + $0xf0] sm:$0xff] %v1424
          %1457 = vst [vmem:[#allocation2 + $0xf8] sm:$0xff] %v1425
        $region52: #{tpu_custom_call.1} parent=31 // pred_fallthru
          _
        // Predicated region
        $region53: #{tpu_custom_call.1} parent=31 // pred_check
          %p1458 = pneg %p346
        $region54: #{tpu_custom_call.1} parent=31 // pred_check_branch
          %1460 = sbr.rel (%p1458) target = $region56
        $region55: #{tpu_custom_call.1} parent=31 // pred_region
          %v1461 = vld [vmem:[#allocation2] sm:$0xff]
          %v1462 = vld [vmem:[#allocation2 + $0x8] sm:$0xff]
          %v1463 = vld [vmem:[#allocation2 + $0x10] sm:$0xff]
          %v1464 = vld [vmem:[#allocation2 + $0x18] sm:$0xff]
          %v1465 = vld [vmem:[#allocation2 + $0x20] sm:$0xff]
          %v1466 = vld [vmem:[#allocation2 + $0x28] sm:$0xff]
          %v1467 = vld [vmem:[#allocation2 + $0x30] sm:$0xff]
          %v1468 = vld [vmem:[#allocation2 + $0x38] sm:$0xff]
          %v1469 = vld [vmem:[#allocation2 + $0x40] sm:$0xff]
          %v1470 = vld [vmem:[#allocation2 + $0x48] sm:$0xff]
          %v1471 = vld [vmem:[#allocation2 + $0x50] sm:$0xff]
          %v1472 = vld [vmem:[#allocation2 + $0x58] sm:$0xff]
          %v1473 = vld [vmem:[#allocation2 + $0x60] sm:$0xff]
          %v1474 = vld [vmem:[#allocation2 + $0x68] sm:$0xff]
          %v1475 = vld [vmem:[#allocation2 + $0x70] sm:$0xff]
          %v1476 = vld [vmem:[#allocation2 + $0x78] sm:$0xff]
          %v1477 = vld [vmem:[#allocation2 + $0x80] sm:$0xff]
          %v1478 = vld [vmem:[#allocation2 + $0x88] sm:$0xff]
          %v1479 = vld [vmem:[#allocation2 + $0x90] sm:$0xff]
          %v1480 = vld [vmem:[#allocation2 + $0x98] sm:$0xff]
          %v1481 = vld [vmem:[#allocation2 + $0xa0] sm:$0xff]
          %v1482 = vld [vmem:[#allocation2 + $0xa8] sm:$0xff]
          %v1483 = vld [vmem:[#allocation2 + $0xb0] sm:$0xff]
          %v1484 = vld [vmem:[#allocation2 + $0xb8] sm:$0xff]
          %v1485 = vld [vmem:[#allocation2 + $0xc0] sm:$0xff]
          %v1486 = vld [vmem:[#allocation2 + $0xc8] sm:$0xff]
          %v1487 = vld [vmem:[#allocation2 + $0xd0] sm:$0xff]
          %v1488 = vld [vmem:[#allocation2 + $0xd8] sm:$0xff]
          %v1489 = vld [vmem:[#allocation2 + $0xe0] sm:$0xff]
          %v1490 = vld [vmem:[#allocation2 + $0xe8] sm:$0xff]
          %v1491 = vld [vmem:[#allocation2 + $0xf0] sm:$0xff]
          %v1492 = vld [vmem:[#allocation2 + $0xf8] sm:$0xff]
          %v1493 = vpack.c.bf16 %v1462, %v1461
          %v1494 = vpack.c.bf16 %v1464, %v1463
          %v1495 = vpack.c.bf16 %v1466, %v1465
          %v1496 = vpack.c.bf16 %v1468, %v1467
          %v1497 = vpack.c.bf16 %v1470, %v1469
          %v1498 = vpack.c.bf16 %v1472, %v1471
          %v1499 = vpack.c.bf16 %v1474, %v1473
          %v1500 = vpack.c.bf16 %v1476, %v1475
          %v1501 = vpack.c.bf16 %v1478, %v1477
          %v1502 = vpack.c.bf16 %v1480, %v1479
          %v1503 = vpack.c.bf16 %v1482, %v1481
          %v1504 = vpack.c.bf16 %v1484, %v1483
          %v1505 = vpack.c.bf16 %v1486, %v1485
          %v1506 = vpack.c.bf16 %v1488, %v1487
          %v1507 = vpack.c.bf16 %v1490, %v1489
          %v1508 = vpack.c.bf16 %v1492, %v1491
          %v1525 = vunpack.c.l.b16 %v1493
          %v1526 = vunpack.c.h.b16 %v1493
          %v1527 = vunpack.c.l.b16 %v1494
          %v1528 = vunpack.c.h.b16 %v1494
          %v1529 = vunpack.c.l.b16 %v1495
          %v1530 = vunpack.c.h.b16 %v1495
          %v1531 = vunpack.c.l.b16 %v1496
          %v1532 = vunpack.c.h.b16 %v1496
          %v1533 = vunpack.c.l.b16 %v1497
          %v1534 = vunpack.c.h.b16 %v1497
          %v1535 = vunpack.c.l.b16 %v1498
          %v1536 = vunpack.c.h.b16 %v1498
          %v1537 = vunpack.c.l.b16 %v1499
          %v1538 = vunpack.c.h.b16 %v1499
          %v1539 = vunpack.c.l.b16 %v1500
          %v1540 = vunpack.c.h.b16 %v1500
          %v1541 = vunpack.c.l.b16 %v1501
          %v1542 = vunpack.c.h.b16 %v1501
          %v1543 = vunpack.c.l.b16 %v1502
          %v1544 = vunpack.c.h.b16 %v1502
          %v1545 = vunpack.c.l.b16 %v1503
          %v1546 = vunpack.c.h.b16 %v1503
          %v1547 = vunpack.c.l.b16 %v1504
          %v1548 = vunpack.c.h.b16 %v1504
          %v1549 = vunpack.c.l.b16 %v1505
          %v1550 = vunpack.c.h.b16 %v1505
          %v1551 = vunpack.c.l.b16 %v1506
          %v1552 = vunpack.c.h.b16 %v1506
          %v1553 = vunpack.c.l.b16 %v1507
          %v1554 = vunpack.c.h.b16 %v1507
          %v1555 = vunpack.c.l.b16 %v1508
          %v1556 = vunpack.c.h.b16 %v1508
          %v1557 = vpack.c.b16 %v1525, %v1525
          %v1558 = vpack.c.b16 %v1526, %v1526
          %v1559 = vpack.c.b16 %v1527, %v1527
          %v1560 = vpack.c.b16 %v1528, %v1528
          %v1561 = vpack.c.b16 %v1529, %v1529
          %v1562 = vpack.c.b16 %v1530, %v1530
          %v1563 = vpack.c.b16 %v1531, %v1531
          %v1564 = vpack.c.b16 %v1532, %v1532
          %v1565 = vpack.c.b16 %v1533, %v1533
          %v1566 = vpack.c.b16 %v1534, %v1534
          %v1567 = vpack.c.b16 %v1535, %v1535
          %v1568 = vpack.c.b16 %v1536, %v1536
          %v1569 = vpack.c.b16 %v1537, %v1537
          %v1570 = vpack.c.b16 %v1538, %v1538
          %v1571 = vpack.c.b16 %v1539, %v1539
          %v1572 = vpack.c.b16 %v1540, %v1540
          %v1573 = vpack.c.b16 %v1541, %v1541
          %v1574 = vpack.c.b16 %v1542, %v1542
          %v1575 = vpack.c.b16 %v1543, %v1543
          %v1576 = vpack.c.b16 %v1544, %v1544
          %v1577 = vpack.c.b16 %v1545, %v1545
          %v1578 = vpack.c.b16 %v1546, %v1546
          %v1579 = vpack.c.b16 %v1547, %v1547
          %v1580 = vpack.c.b16 %v1548, %v1548
          %v1581 = vpack.c.b16 %v1549, %v1549
          %v1582 = vpack.c.b16 %v1550, %v1550
          %v1583 = vpack.c.b16 %v1551, %v1551
          %v1584 = vpack.c.b16 %v1552, %v1552
          %v1585 = vpack.c.b16 %v1553, %v1553
          %v1586 = vpack.c.b16 %v1554, %v1554
          %v1587 = vpack.c.b16 %v1555, %v1555
          %v1588 = vpack.c.b16 %v1556, %v1556
          %1621 = vst [vmem:[%s324] sm:$0xf] %v1557
          %1622 = vst [vmem:[%s324 + $0x4] sm:$0xf] %v1558
          %1623 = vst [vmem:[%s324 + $0x8] sm:$0xf] %v1559
          %1624 = vst [vmem:[%s324 + $0xc] sm:$0xf] %v1560
          %1625 = vst [vmem:[%s324 + $0x10] sm:$0xf] %v1561
          %1626 = vst [vmem:[%s324 + $0x14] sm:$0xf] %v1562
          %1627 = vst [vmem:[%s324 + $0x18] sm:$0xf] %v1563
          %1628 = vst [vmem:[%s324 + $0x1c] sm:$0xf] %v1564
          %1629 = vst [vmem:[%s324 + $0x20] sm:$0xf] %v1565
          %1630 = vst [vmem:[%s324 + $0x24] sm:$0xf] %v1566
          %1631 = vst [vmem:[%s324 + $0x28] sm:$0xf] %v1567
          %1632 = vst [vmem:[%s324 + $0x2c] sm:$0xf] %v1568
          %1633 = vst [vmem:[%s324 + $0x30] sm:$0xf] %v1569
          %1634 = vst [vmem:[%s324 + $0x34] sm:$0xf] %v1570
          %1635 = vst [vmem:[%s324 + $0x38] sm:$0xf] %v1571
          %1636 = vst [vmem:[%s324 + $0x3c] sm:$0xf] %v1572
          %1637 = vst [vmem:[%s324 + $0x40] sm:$0xf] %v1573
          %1638 = vst [vmem:[%s324 + $0x44] sm:$0xf] %v1574
          %1639 = vst [vmem:[%s324 + $0x48] sm:$0xf] %v1575
          %1640 = vst [vmem:[%s324 + $0x4c] sm:$0xf] %v1576
          %1641 = vst [vmem:[%s324 + $0x50] sm:$0xf] %v1577
          %1642 = vst [vmem:[%s324 + $0x54] sm:$0xf] %v1578
          %1643 = vst [vmem:[%s324 + $0x58] sm:$0xf] %v1579
          %1644 = vst [vmem:[%s324 + $0x5c] sm:$0xf] %v1580
          %1645 = vst [vmem:[%s324 + $0x60] sm:$0xf] %v1581
          %1646 = vst [vmem:[%s324 + $0x64] sm:$0xf] %v1582
          %1647 = vst [vmem:[%s324 + $0x68] sm:$0xf] %v1583
          %1648 = vst [vmem:[%s324 + $0x6c] sm:$0xf] %v1584
          %1649 = vst [vmem:[%s324 + $0x70] sm:$0xf] %v1585
          %1650 = vst [vmem:[%s324 + $0x74] sm:$0xf] %v1586
          %1651 = vst [vmem:[%s324 + $0x78] sm:$0xf] %v1587
          %1652 = vst [vmem:[%s324 + $0x7c] sm:$0xf] %v1588
          %v1653 = vld [vmem:[%s297] sm:$0xff]
          %v1654 = vld [vmem:[%s297 + $0x8] sm:$0xff]
          %v1655 = vld [vmem:[%s297 + $0x10] sm:$0xff]
          %v1656 = vld [vmem:[%s297 + $0x18] sm:$0xff]
          %v1657 = vld [vmem:[%s297 + $0x20] sm:$0xff]
          %v1658 = vld [vmem:[%s297 + $0x28] sm:$0xff]
          %v1659 = vld [vmem:[%s297 + $0x30] sm:$0xff]
          %v1660 = vld [vmem:[%s297 + $0x38] sm:$0xff]
          %v1661 = vld [vmem:[%s297 + $0x40] sm:$0xff]
          %v1662 = vld [vmem:[%s297 + $0x48] sm:$0xff]
          %v1663 = vld [vmem:[%s297 + $0x50] sm:$0xff]
          %v1664 = vld [vmem:[%s297 + $0x58] sm:$0xff]
          %v1665 = vld [vmem:[%s297 + $0x60] sm:$0xff]
          %v1666 = vld [vmem:[%s297 + $0x68] sm:$0xff]
          %v1667 = vld [vmem:[%s297 + $0x70] sm:$0xff]
          %v1668 = vld [vmem:[%s297 + $0x78] sm:$0xff]
          %v1669 = vld [vmem:[%s297 + $0x80] sm:$0xff]
          %v1670 = vld [vmem:[%s297 + $0x88] sm:$0xff]
          %v1671 = vld [vmem:[%s297 + $0x90] sm:$0xff]
          %v1672 = vld [vmem:[%s297 + $0x98] sm:$0xff]
          %v1673 = vld [vmem:[%s297 + $0xa0] sm:$0xff]
          %v1674 = vld [vmem:[%s297 + $0xa8] sm:$0xff]
          %v1675 = vld [vmem:[%s297 + $0xb0] sm:$0xff]
          %v1676 = vld [vmem:[%s297 + $0xb8] sm:$0xff]
          %v1677 = vld [vmem:[%s297 + $0xc0] sm:$0xff]
          %v1678 = vld [vmem:[%s297 + $0xc8] sm:$0xff]
          %v1679 = vld [vmem:[%s297 + $0xd0] sm:$0xff]
          %v1680 = vld [vmem:[%s297 + $0xd8] sm:$0xff]
          %v1681 = vld [vmem:[%s297 + $0xe0] sm:$0xff]
          %v1682 = vld [vmem:[%s297 + $0xe8] sm:$0xff]
          %v1683 = vld [vmem:[%s297 + $0xf0] sm:$0xff]
          %v1684 = vld [vmem:[%s297 + $0xf8] sm:$0xff]
          %v1685 = vadd.f32 %v1653, %v1461
          %v1686 = vadd.f32 %v1654, %v1462
          %v1687 = vadd.f32 %v1655, %v1463
          %v1688 = vadd.f32 %v1656, %v1464
          %v1689 = vadd.f32 %v1657, %v1465
          %v1690 = vadd.f32 %v1658, %v1466
          %v1691 = vadd.f32 %v1659, %v1467
          %v1692 = vadd.f32 %v1660, %v1468
          %v1693 = vadd.f32 %v1661, %v1469
          %v1694 = vadd.f32 %v1662, %v1470
          %v1695 = vadd.f32 %v1663, %v1471
          %v1696 = vadd.f32 %v1664, %v1472
          %v1697 = vadd.f32 %v1665, %v1473
          %v1698 = vadd.f32 %v1666, %v1474
          %v1699 = vadd.f32 %v1667, %v1475
          %v1700 = vadd.f32 %v1668, %v1476
          %v1701 = vadd.f32 %v1669, %v1477
          %v1702 = vadd.f32 %v1670, %v1478
          %v1703 = vadd.f32 %v1671, %v1479
          %v1704 = vadd.f32 %v1672, %v1480
          %v1705 = vadd.f32 %v1673, %v1481
          %v1706 = vadd.f32 %v1674, %v1482
          %v1707 = vadd.f32 %v1675, %v1483
          %v1708 = vadd.f32 %v1676, %v1484
          %v1709 = vadd.f32 %v1677, %v1485
          %v1710 = vadd.f32 %v1678, %v1486
          %v1711 = vadd.f32 %v1679, %v1487
          %v1712 = vadd.f32 %v1680, %v1488
          %v1713 = vadd.f32 %v1681, %v1489
          %v1714 = vadd.f32 %v1682, %v1490
          %v1715 = vadd.f32 %v1683, %v1491
          %v1716 = vadd.f32 %v1684, %v1492
          %1717 = vst [vmem:[%s331] sm:$0xff] %v1685
          %1718 = vst [vmem:[%s331 + $0x8] sm:$0xff] %v1686
          %1719 = vst [vmem:[%s331 + $0x10] sm:$0xff] %v1687
          %1720 = vst [vmem:[%s331 + $0x18] sm:$0xff] %v1688
          %1721 = vst [vmem:[%s331 + $0x20] sm:$0xff] %v1689
          %1722 = vst [vmem:[%s331 + $0x28] sm:$0xff] %v1690
          %1723 = vst [vmem:[%s331 + $0x30] sm:$0xff] %v1691
          %1724 = vst [vmem:[%s331 + $0x38] sm:$0xff] %v1692
          %1725 = vst [vmem:[%s331 + $0x40] sm:$0xff] %v1693
          %1726 = vst [vmem:[%s331 + $0x48] sm:$0xff] %v1694
          %1727 = vst [vmem:[%s331 + $0x50] sm:$0xff] %v1695
          %1728 = vst [vmem:[%s331 + $0x58] sm:$0xff] %v1696
          %1729 = vst [vmem:[%s331 + $0x60] sm:$0xff] %v1697
          %1730 = vst [vmem:[%s331 + $0x68] sm:$0xff] %v1698
          %1731 = vst [vmem:[%s331 + $0x70] sm:$0xff] %v1699
          %1732 = vst [vmem:[%s331 + $0x78] sm:$0xff] %v1700
          %1733 = vst [vmem:[%s331 + $0x80] sm:$0xff] %v1701
          %1734 = vst [vmem:[%s331 + $0x88] sm:$0xff] %v1702
          %1735 = vst [vmem:[%s331 + $0x90] sm:$0xff] %v1703
          %1736 = vst [vmem:[%s331 + $0x98] sm:$0xff] %v1704
          %1737 = vst [vmem:[%s331 + $0xa0] sm:$0xff] %v1705
          %1738 = vst [vmem:[%s331 + $0xa8] sm:$0xff] %v1706
          %1739 = vst [vmem:[%s331 + $0xb0] sm:$0xff] %v1707
          %1740 = vst [vmem:[%s331 + $0xb8] sm:$0xff] %v1708
          %1741 = vst [vmem:[%s331 + $0xc0] sm:$0xff] %v1709
          %1742 = vst [vmem:[%s331 + $0xc8] sm:$0xff] %v1710
          %1743 = vst [vmem:[%s331 + $0xd0] sm:$0xff] %v1711
          %1744 = vst [vmem:[%s331 + $0xd8] sm:$0xff] %v1712
          %1745 = vst [vmem:[%s331 + $0xe0] sm:$0xff] %v1713
          %1746 = vst [vmem:[%s331 + $0xe8] sm:$0xff] %v1714
          %1747 = vst [vmem:[%s331 + $0xf0] sm:$0xff] %v1715
          %1748 = vst [vmem:[%s331 + $0xf8] sm:$0xff] %v1716
        $region56: #{tpu_custom_call.1} parent=31 // pred_fallthru
          _
        %s1749 = sand.u32 %s149, 1
        %s1750 = scalar_lea.sflag [#allocation8], %s1749
        %s1751 = sand.u32 %s149, 1
        %s1752 = smul.addr %s1751, 128
        %s1753 = scalar_lea.vmem [#allocation12], %s1752
        %s1754 = sand.u32 %s175, 1
        %s1755 = scalar_lea.sflag [#allocation14], %s1754
        %s1756 = sand.u32 %s175, 1
        %s1757 = smul.addr %s1756, 256
        %s1758 = scalar_lea.vmem [#allocation13], %s1757
        // Predicated region
        $region57: #{tpu_custom_call.1} parent=31 // pred_check
          %p1759 = pneg %p159
        $region58: #{tpu_custom_call.1} parent=31 // pred_check_branch
          %1761 = sbr.rel (%p1759) target = $region60
        $region59: #{tpu_custom_call.1} parent=31 // pred_region
          %s1762 = smul.u32 32, %s42
          %s1764 = ssub.s32 2048, 2048
          %1765 = vsyncadd %s1750, %s1764
          %s1766 = smul.addr %s1762, 64
          %s1767 = scalar_lea.hbm %s5, %s1766
          %s1768 = sshll.u32 %s1753, 4
          %s1769 = int_to_ptr.vmem [resolvable:$true] %s1768
          %1774 = dma.vmem_to_hbm [thread:$0]  %s1769, 2048, %s1767, %s1750, 64, 64, 4
        $region60: #{tpu_custom_call.1} parent=31 // pred_fallthru
          _
        // Predicated region
        $region61: #{tpu_custom_call.1} parent=31 // pred_check
          %p1775 = pneg %p185
        $region62: #{tpu_custom_call.1} parent=31 // pred_check_branch
          %1777 = sbr.rel (%p1775) target = $region64
        $region63: #{tpu_custom_call.1} parent=31 // pred_region
          %s1778 = smul.u32 32, %s42
          %s1780 = ssub.s32 4096, 4096
          %1781 = vsyncadd %s1755, %s1780
          %s1782 = smul.addr %s1778, 128
          %s1783 = scalar_lea.hbm %s6, %s1782
          %s1784 = sshll.u32 %s1758, 4
          %s1785 = int_to_ptr.vmem [resolvable:$true] %s1784
          %1790 = dma.vmem_to_hbm [thread:$0]  %s1785, 4096, %s1783, %s1755, 128, 128, 8
        $region64: #{tpu_custom_call.1} parent=31 // pred_fallthru
          _
      $region32: #{tpu_custom_call.1} parent=5 // pred_fallthru
        _
      %p1791 = scmp.le.s32.totalorder 2, %s33
      // Predicated region
      $region65: #{tpu_custom_call.1} parent=5 // pred_check
        %p1792 = pneg %p1791
      $region66: #{tpu_custom_call.1} parent=5 // pred_check_branch
        %1794 = sbr.rel (%p1792) target = $region68
      $region67: #{tpu_custom_call.1} parent=5 // pred_region
        %s1795 = ssub.s32 %s33, 2
        // Predicated region
        $region69: #{tpu_custom_call.1} parent=67 // pred_check
          %p1796 = pneg %p165
        $region70: #{tpu_custom_call.1} parent=67 // pred_check_branch
          %1798 = sbr.rel (%p1796) target = $region72
        $region71: #{tpu_custom_call.1} parent=67 // pred_region
          %s1799 = sand.u32 %s150, 1
          %s1800 = scalar_lea.sflag [#allocation8], %s1799
          %s1801 = sand.u32 %s150, 1
          %s1802 = smul.addr %s1801, 128
          %s1803 = scalar_lea.vmem [#allocation12], %s1802
          %1804 = dma.done %s1800, 2048
        $region72: #{tpu_custom_call.1} parent=67 // pred_fallthru
          _
        // Predicated region
        $region73: #{tpu_custom_call.1} parent=67 // pred_check
          %p1805 = pneg %p191
        $region74: #{tpu_custom_call.1} parent=67 // pred_check_branch
          %1807 = sbr.rel (%p1805) target = $region76
        $region75: #{tpu_custom_call.1} parent=67 // pred_region
          %s1808 = sand.u32 %s176, 1
          %s1809 = scalar_lea.sflag [#allocation14], %s1808
          %s1810 = sand.u32 %s176, 1
          %s1811 = smul.addr %s1810, 256
          %s1812 = scalar_lea.vmem [#allocation13], %s1811
          %1813 = dma.done %s1809, 4096
        $region76: #{tpu_custom_call.1} parent=67 // pred_fallthru
          _
      $region68: #{tpu_custom_call.1} parent=5 // pred_fallthru
        _
    $region6: #{tpu_custom_call.1} parent=1 // loop_footer
      %s37 = sadd.s32 1, %s33
    $region7: #{tpu_custom_call.1} parent=1 // loop_footer_branch
      %32 = sbr.rel target = $region3
    $region8: #{tpu_custom_call.1} parent=1 // loop_exit
      _
    %1814 = vsyncpa [#allocation7], 1
    %s1815 = scalar_lea.sflag [#allocation7], 1
    %1816 = vsyncpa %s1815, 1
    %1817 = vsyncpa [#allocation10], 1
    %1818 = vsyncpa [#allocation8], 1
    %s1819 = scalar_lea.sflag [#allocation8], 1
    %1820 = vsyncpa %s1819, 1
    %1821 = vsyncpa [#allocation14], 1
    %s1822 = scalar_lea.sflag [#allocation14], 1
    %1823 = vsyncpa %s1822, 1

</llo_original>
